<compile_context>
chip_gen: v7x
topology: tpu7x:2x2x1
jax: 0.10.0
libtpu: 0.0.40
codegen_flags: <defaults>
</compile_context>

<pallas_src>
import functools

import jax
import jax.numpy as jnp
from jax.experimental import pallas as pl
from jax.experimental.pallas import tpu as pltpu


# ----------------------------------------------------------------------------
# Fused head kernel: (C, H*W) pixels-on-lanes, one MXU matmul per 3x3 conv.
# ----------------------------------------------------------------------------
def _make_head_kernel(H, W, feat_planes, num_conv):
    HW = H * W
    F = feat_planes
    n_extra = num_conv - 1
    n_in = 3 + 4 * n_extra + 4   # x, (w0,b0), extra conv pairs, cls/loc preds

    def kernel(*refs):
        in_refs = refs[:n_in]
        o_cls_ref, o_loc_ref = refs[n_in], refs[n_in + 1]

        x_ref = in_refs[0]
        w0 = in_refs[1][...]
        b0 = in_refs[2][...]
        idx = 3
        extra = []
        for _ in range(n_extra):
            extra.append(tuple(in_refs[idx + t][...] for t in range(4)))
            idx += 4
        w_cls = in_refs[idx][...]
        b_cls = in_refs[idx + 1][...]
        w_loc = in_refs[idx + 2][...]
        b_loc = in_refs[idx + 3][...]

        # column coordinate of every flattened pixel (lane axis = H*W)
        pix = jax.lax.broadcasted_iota(jnp.int32, (1, HW), 1)
        xx = pix % W
        ok_left = xx >= 1          # tap reads column x-1 -> invalid at x == 0
        ok_right = xx <= W - 2     # tap reads column x+1 -> invalid at x == W-1
        col_ok = (ok_left, None, ok_right)

        def conv3x3(h, wmat, bias, relu):
            # h: (Cin, HW)  wmat: (Cout, 9*Cin)  bias: (Cout, 1)
            cin = h.shape[0]
            zpad = jnp.zeros((cin, W + 1), jnp.float32)
            hp = jnp.concatenate([zpad, h, zpad], axis=1)    # in-kernel SAME pad
            cols = []
            for dy in range(3):
                for dx in range(3):
                    off = (dy - 1) * W + (dx - 1)
                    tap = hp[:, W + 1 + off: W + 1 + off + HW]   # static slice
                    m = col_ok[dx]
                    if m is not None:
                        tap = jnp.where(m, tap, 0.0)             # mask col wrap
                    cols.append(tap)
            xcol = jnp.concatenate(cols, axis=0)             # (9*Cin, HW) im2col
            out = jax.lax.dot_general(                       # one MXU push, K=9*Cin
                wmat, xcol,
                dimension_numbers=(((1,), (0,)), ((), ())),
                preferred_element_type=jnp.float32)
            out = out + bias
            if relu:
                out = jnp.maximum(out, 0.0)
            return out

        x = x_ref[0].astype(jnp.float32)                     # (Cin, HW)

        # first cls/box convs share the input -> one fused matmul, split after
        h = conv3x3(x, w0, b0, relu=True)                    # (2F, HW)
        cls_h = h[:F]
        box_h = h[F:]
        for (wc, bc, wb, bb) in extra:
            cls_h = conv3x3(cls_h, wc, bc, relu=True)
            box_h = conv3x3(box_h, wb, bb, relu=True)

        o_cls_ref[0] = conv3x3(cls_h, w_cls, b_cls, relu=False).astype(o_cls_ref.dtype)
        o_loc_ref[0] = conv3x3(box_h, w_loc, b_loc, relu=False).astype(o_loc_ref.dtype)

    return kernel


@functools.partial(jax.jit,
                   static_argnames=("feat_planes", "num_conv", "cls_out", "loc_out"))
def _head_forward(weights, x_nchw, *, feat_planes, num_conv, cls_out, loc_out):
    """Run the fused head on a (N, Cin, H, W) batch. Returns NCHW predictions."""
    N, Cin, H, W = x_nchw.shape
    HW = H * W
    x = x_nchw.reshape(N, Cin, HW)                           # free reshape, NCHW-native

    kernel = _make_head_kernel(H, W, feat_planes, num_conv)
    w_specs = [pl.BlockSpec(w.shape, lambda n: (0, 0)) for w in weights]

    cls_p, loc_p = pl.pallas_call(
        kernel,
        out_shape=(jax.ShapeDtypeStruct((N, cls_out, HW), x.dtype),
                   jax.ShapeDtypeStruct((N, loc_out, HW), x.dtype)),
        grid=(N,),
        in_specs=[pl.BlockSpec((1, Cin, HW), lambda n: (n, 0, 0))] + w_specs,
        out_specs=(pl.BlockSpec((1, cls_out, HW), lambda n: (n, 0, 0)),
                   pl.BlockSpec((1, loc_out, HW), lambda n: (n, 0, 0))),
        compiler_params=pltpu.CompilerParams(
            dimension_semantics=("parallel",)),
    )(x, *weights)

    return (cls_p.reshape(N, cls_out, H, W),
            loc_p.reshape(N, loc_out, H, W))


# ----------------------------------------------------------------------------
# BaseNet (RetinaNet head) in JAX
# ----------------------------------------------------------------------------
class BaseNetPallas:
    def __init__(self, inplanes, num_classes, num_level=5,
                 feat_planes=8, num_anchors=2, num_conv=2, seed=0):
        self.prefix = "BaseNet"
        self.inplanes = inplanes
        self.num_classes = num_classes
        self.num_level = num_level
        self.feat_planes = feat_planes
        self.num_anchors = num_anchors
        self.num_conv = num_conv
        self.cls_out = num_anchors * (num_classes - 1)
        self.loc_out = num_anchors * 4

        key = jax.random.PRNGKey(seed)
        keys = jax.random.split(key, 2 * num_conv + 2)

        def make_conv(k, cin, cout):          # PyTorch OIHW layout
            kw, kb = jax.random.split(k)
            w = 0.05 * jax.random.normal(kw, (cout, cin, 3, 3), jnp.float32)
            b = 0.01 * jax.random.normal(kb, (cout,), jnp.float32)
            return w, b

        ki = 0
        self.cls_subnet_raw = []
        cin = inplanes
        for _ in range(num_conv):
            self.cls_subnet_raw.append(make_conv(keys[ki], cin, feat_planes)); ki += 1
            cin = feat_planes
        self.box_subnet_raw = []
        cin = inplanes
        for _ in range(num_conv):
            self.box_subnet_raw.append(make_conv(keys[ki], cin, feat_planes)); ki += 1
            cin = feat_planes
        self.cls_pred_raw = make_conv(keys[ki], feat_planes, self.cls_out); ki += 1
        self.loc_pred_raw = make_conv(keys[ki], feat_planes, self.loc_out); ki += 1

        # ---- pack weights for the fused kernel ------------------------------
        def pack(w):   # OIHW (Co,Ci,3,3) -> (Co, 9*Ci), row index = (ky*3+kx)*Ci + ci
            co, ci = w.shape[0], w.shape[1]
            return jnp.transpose(w, (0, 2, 3, 1)).reshape(co, 9 * ci)

        w_c0, b_c0 = self.cls_subnet_raw[0]
        w_b0, b_b0 = self.box_subnet_raw[0]
        weights = [jnp.concatenate([pack(w_c0), pack(w_b0)], axis=0),
                   jnp.concatenate([b_c0, b_b0]).reshape(-1, 1)]
        for i in range(1, num_conv):
            wc, bc = self.cls_subnet_raw[i]
            wb, bb = self.box_subnet_raw[i]
            weights += [pack(wc), bc.reshape(-1, 1), pack(wb), bb.reshape(-1, 1)]
        wcp, bcp = self.cls_pred_raw
        wlp, blp = self.loc_pred_raw
        weights += [pack(wcp), bcp.reshape(-1, 1), pack(wlp), blp.reshape(-1, 1)]
        self.kernel_weights = tuple(weights)

    # fused Pallas head for one (possibly batched-over-levels) feature map
    def forward_net(self, x_nchw, lvl=None):
        return _head_forward(self.kernel_weights, x_nchw,
                             feat_planes=self.feat_planes, num_conv=self.num_conv,
                             cls_out=self.cls_out, loc_out=self.loc_out)

    # pure-JAX NCHW reference (for correctness checking only)
    def reference_forward_net(self, x):
        def conv(x, w, b, relu):
            y = jax.lax.conv_general_dilated(
                x, w, window_strides=(1, 1), padding=((1, 1), (1, 1)),
                dimension_numbers=('NCHW', 'OIHW', 'NCHW'),
                precision=jax.lax.Precision.HIGHEST)
            y = y + b[None, :, None, None]
            return jnp.maximum(y, 0.0) if relu else y
        cls_f, box_f = x, x
        for (w, b) in self.cls_subnet_raw:
            cls_f = conv(cls_f, w, b, True)
        for (w, b) in self.box_subnet_raw:
            box_f = conv(box_f, w, b, True)
        return (conv(cls_f, *self.cls_pred_raw, False),
                conv(box_f, *self.loc_pred_raw, False))

    def forward(self, inp):
        features = inp['features']
        # group pyramid levels with identical shape -> one fused call per group
        groups, order = {}, []
        for lvl in range(self.num_level):
            k = tuple(features[lvl].shape)
            if k not in groups:
                groups[k] = []
                order.append(k)
            groups[k].append(lvl)

        preds = [None] * self.num_level
        for k in order:
            lvls = groups[k]
            if len(lvls) == 1:
                x = features[lvls[0]]
            else:
                x = jnp.concatenate([features[l] for l in lvls], axis=0)
            cls_all, loc_all = self.forward_net(x)
            n = features[lvls[0]].shape[0]
            for j, l in enumerate(lvls):
                preds[l] = (cls_all[j * n:(j + 1) * n], loc_all[j * n:(j + 1) * n])

        output = {}
        output['preds'] = preds
        if 'RPN' in self.prefix:
            output.update({'rpn_preds': output['preds']})
        output.update({'deploy_output_node': output['preds']})
        return output


if __name__ == "__main__":
    key = jax.random.PRNGKey(0)
    inplanes = 8
    num_classes = 3     # includes background
    num_level = 5
    batch = 2
    spatial = [16, 8, 8, 4, 4]

    feat_keys = jax.random.split(key, num_level)
    features = [
        jax.random.normal(feat_keys[l], (batch, inplanes, s, s), jnp.float32)
        for l, s in enumerate(spatial)
    ]

    net = BaseNetPallas(inplanes, num_classes, num_level=num_level,
                        feat_planes=8, num_anchors=2, num_conv=2, seed=0)

    out = net.forward({'features': features})
    for cls_pred, loc_pred in out['preds']:
        jax.block_until_ready(cls_pred)
        jax.block_until_ready(loc_pred)

    # shape sanity: cls has num_anchors*(num_classes-1)=4 chans, loc has 8.
    for (cls_pred, loc_pred), s in zip(out['preds'], spatial):
        assert cls_pred.shape == (batch, 4, s, s)
        assert loc_pred.shape == (batch, 8, s, s)
    assert out['deploy_output_node'] is out['preds']

    # numerical check vs. a pure-JAX NCHW reference of the same head
    for lvl in range(num_level):
        ref_cls, ref_loc = net.reference_forward_net(features[lvl])
        got_cls, got_loc = out['preds'][lvl]
        assert jnp.allclose(ref_cls, got_cls, atol=1e-3, rtol=1e-3), f"cls mismatch @ level {lvl}"
        assert jnp.allclose(ref_loc, got_loc, atol=1e-3, rtol=1e-3), f"loc mismatch @ level {lvl}"

    print("KERNEL_OK")
</pallas_src>

<mosaic_0001>
module attributes {stable_mosaic.version = 11 : i64} {
  func.func @kernel(%arg0: i32, %arg1: memref<1x8x256xf32, #tpu.memory_space<vmem>>, %arg2: memref<16x72xf32, #tpu.memory_space<vmem>>, %arg3: memref<16x1xf32, #tpu.memory_space<vmem>>, %arg4: memref<8x72xf32, #tpu.memory_space<vmem>>, %arg5: memref<8x1xf32, #tpu.memory_space<vmem>>, %arg6: memref<8x72xf32, #tpu.memory_space<vmem>>, %arg7: memref<8x1xf32, #tpu.memory_space<vmem>>, %arg8: memref<4x72xf32, #tpu.memory_space<vmem>>, %arg9: memref<4x1xf32, #tpu.memory_space<vmem>>, %arg10: memref<8x72xf32, #tpu.memory_space<vmem>>, %arg11: memref<8x1xf32, #tpu.memory_space<vmem>>, %arg12: memref<1x4x256xf32, #tpu.memory_space<vmem>>, %arg13: memref<1x8x256xf32, #tpu.memory_space<vmem>>) attributes {dimension_semantics = [#tpu.dimension_semantics<parallel>], iteration_bounds = array<i64: 2>, scalar_prefetch = 0 : i64, scratch_operands = 0 : i64, tpu.core_type = #tpu.core_type<tc>, window_params = [{transform_indices = @transform_0, window_bounds = array<i64: 1, 8, 256>}, {pipeline_mode = #tpu.pipeline_mode<synchronous>, transform_indices = @transform_1, window_bounds = array<i64: 16, 72>}, {pipeline_mode = #tpu.pipeline_mode<synchronous>, transform_indices = @transform_2, window_bounds = array<i64: 16, 1>}, {pipeline_mode = #tpu.pipeline_mode<synchronous>, transform_indices = @transform_3, window_bounds = array<i64: 8, 72>}, {pipeline_mode = #tpu.pipeline_mode<synchronous>, transform_indices = @transform_4, window_bounds = array<i64: 8, 1>}, {pipeline_mode = #tpu.pipeline_mode<synchronous>, transform_indices = @transform_5, window_bounds = array<i64: 8, 72>}, {pipeline_mode = #tpu.pipeline_mode<synchronous>, transform_indices = @transform_6, window_bounds = array<i64: 8, 1>}, {pipeline_mode = #tpu.pipeline_mode<synchronous>, transform_indices = @transform_7, window_bounds = array<i64: 4, 72>}, {pipeline_mode = #tpu.pipeline_mode<synchronous>, transform_indices = @transform_8, window_bounds = array<i64: 4, 1>}, {pipeline_mode = #tpu.pipeline_mode<synchronous>, transform_indices = @transform_9, window_bounds = array<i64: 8, 72>}, {pipeline_mode = #tpu.pipeline_mode<synchronous>, transform_indices = @transform_10, window_bounds = array<i64: 8, 1>}, {transform_indices = @transform_11, window_bounds = array<i64: 1, 4, 256>}, {transform_indices = @transform_12, window_bounds = array<i64: 1, 8, 256>}]} {
    %c0 = arith.constant 0 : index
    %c0_0 = arith.constant 0 : index
    %0 = vector.load %arg2[%c0, %c0_0] : memref<16x72xf32, #tpu.memory_space<vmem>>, vector<16x72xf32>
    %c0_1 = arith.constant 0 : index
    %c0_2 = arith.constant 0 : index
    %1 = vector.load %arg3[%c0_1, %c0_2] : memref<16x1xf32, #tpu.memory_space<vmem>>, vector<16x1xf32>
    %c0_3 = arith.constant 0 : index
    %c0_4 = arith.constant 0 : index
    %2 = vector.load %arg4[%c0_3, %c0_4] : memref<8x72xf32, #tpu.memory_space<vmem>>, vector<8x72xf32>
    %c0_5 = arith.constant 0 : index
    %c0_6 = arith.constant 0 : index
    %3 = vector.load %arg5[%c0_5, %c0_6] : memref<8x1xf32, #tpu.memory_space<vmem>>, vector<8x1xf32>
    %c0_7 = arith.constant 0 : index
    %c0_8 = arith.constant 0 : index
    %4 = vector.load %arg6[%c0_7, %c0_8] : memref<8x72xf32, #tpu.memory_space<vmem>>, vector<8x72xf32>
    %c0_9 = arith.constant 0 : index
    %c0_10 = arith.constant 0 : index
    %5 = vector.load %arg7[%c0_9, %c0_10] : memref<8x1xf32, #tpu.memory_space<vmem>>, vector<8x1xf32>
    %c0_11 = arith.constant 0 : index
    %c0_12 = arith.constant 0 : index
    %6 = vector.load %arg8[%c0_11, %c0_12] : memref<4x72xf32, #tpu.memory_space<vmem>>, vector<4x72xf32>
    %c0_13 = arith.constant 0 : index
    %c0_14 = arith.constant 0 : index
    %7 = vector.load %arg9[%c0_13, %c0_14] : memref<4x1xf32, #tpu.memory_space<vmem>>, vector<4x1xf32>
    %c0_15 = arith.constant 0 : index
    %c0_16 = arith.constant 0 : index
    %8 = vector.load %arg10[%c0_15, %c0_16] : memref<8x72xf32, #tpu.memory_space<vmem>>, vector<8x72xf32>
    %c0_17 = arith.constant 0 : index
    %c0_18 = arith.constant 0 : index
    %9 = vector.load %arg11[%c0_17, %c0_18] : memref<8x1xf32, #tpu.memory_space<vmem>>, vector<8x1xf32>
    %10 = tpu.iota {dimensions = array<i32: 1>} : vector<1x256xi32>
    %c16_i32 = arith.constant 16 : i32
    %c0_i32 = arith.constant 0 : i32
    %11 = arith.cmpi eq, %c16_i32, %c0_i32 : i32
    %c1_i32 = arith.constant 1 : i32
    %12 = arith.select %11, %c1_i32, %c16_i32 : i32
    %13 = vector.broadcast %12 : i32 to vector<1x256xi32>
    %14 = arith.remsi %10, %13 : vector<1x256xi32>
    %c0_i32_19 = arith.constant 0 : i32
    %15 = vector.broadcast %c0_i32_19 : i32 to vector<1x256xi32>
    %16 = arith.cmpi ne, %14, %15 : vector<1x256xi32>
    %c0_i32_20 = arith.constant 0 : i32
    %17 = vector.broadcast %c0_i32_20 : i32 to vector<1x256xi32>
    %18 = arith.cmpi slt, %14, %17 : vector<1x256xi32>
    %c0_i32_21 = arith.constant 0 : i32
    %19 = arith.cmpi slt, %12, %c0_i32_21 : i32
    %20 = vector.broadcast %19 : i1 to vector<1x256xi1>
    %21 = vector.broadcast %20 : vector<1x256xi1> to vector<1x256xi1>
    %22 = arith.xori %18, %21 : vector<1x256xi1>
    %23 = arith.andi %22, %16 : vector<1x256xi1>
    %24 = vector.broadcast %12 : i32 to vector<1x256xi32>
    %25 = arith.addi %14, %24 : vector<1x256xi32>
    %26 = arith.select %23, %25, %14 : vector<1x256xi1>, vector<1x256xi32>
    %c1_i32_22 = arith.constant 1 : i32
    %27 = vector.broadcast %c1_i32_22 : i32 to vector<1x256xi32>
    %28 = arith.cmpi sge, %26, %27 : vector<1x256xi32>
    %c14_i32 = arith.constant 14 : i32
    %29 = vector.broadcast %c14_i32 : i32 to vector<1x256xi32>
    %30 = arith.cmpi sle, %26, %29 : vector<1x256xi32>
    %c0_23 = arith.constant 0 : index
    %c0_24 = arith.constant 0 : index
    %c0_25 = arith.constant 0 : index
    %31 = vector.load %arg1[%c0_23, %c0_24, %c0_25] : memref<1x8x256xf32, #tpu.memory_space<vmem>>, vector<1x8x256xf32>
    %32 = vector.shape_cast %31 : vector<1x8x256xf32> to vector<8x256xf32>
    %cst = arith.constant 0.000000e+00 : f32
    %33 = vector.broadcast %cst : f32 to vector<8x17xf32>
    %34 = tpu.concatenate %33, %32, %33 in 1 : vector<8x17xf32>, vector<8x256xf32>, vector<8x17xf32> -> vector<8x290xf32>
    %35 = vector.extract_strided_slice %34 {offsets = [0, 0], sizes = [8, 256], strides = [1, 1]} : vector<8x290xf32> to vector<8x256xf32>
    %cst_26 = arith.constant 0.000000e+00 : f32
    %36 = vector.shape_cast %28 : vector<1x256xi1> to vector<1x256xi1>
    %37 = vector.broadcast %36 : vector<1x256xi1> to vector<8x256xi1>
    %38 = vector.broadcast %cst_26 : f32 to vector<8x256xf32>
    %39 = arith.select %37, %35, %38 : vector<8x256xi1>, vector<8x256xf32>
    %40 = vector.extract_strided_slice %34 {offsets = [0, 1], sizes = [8, 256], strides = [1, 1]} : vector<8x290xf32> to vector<8x256xf32>
    %41 = vector.extract_strided_slice %34 {offsets = [0, 2], sizes = [8, 256], strides = [1, 1]} : vector<8x290xf32> to vector<8x256xf32>
    %cst_27 = arith.constant 0.000000e+00 : f32
    %42 = vector.shape_cast %30 : vector<1x256xi1> to vector<1x256xi1>
    %43 = vector.broadcast %42 : vector<1x256xi1> to vector<8x256xi1>
    %44 = vector.broadcast %cst_27 : f32 to vector<8x256xf32>
    %45 = arith.select %43, %41, %44 : vector<8x256xi1>, vector<8x256xf32>
    %46 = vector.extract_strided_slice %34 {offsets = [0, 16], sizes = [8, 256], strides = [1, 1]} : vector<8x290xf32> to vector<8x256xf32>
    %cst_28 = arith.constant 0.000000e+00 : f32
    %47 = vector.shape_cast %28 : vector<1x256xi1> to vector<1x256xi1>
    %48 = vector.broadcast %47 : vector<1x256xi1> to vector<8x256xi1>
    %49 = vector.broadcast %cst_28 : f32 to vector<8x256xf32>
    %50 = arith.select %48, %46, %49 : vector<8x256xi1>, vector<8x256xf32>
    %51 = vector.extract_strided_slice %34 {offsets = [0, 17], sizes = [8, 256], strides = [1, 1]} : vector<8x290xf32> to vector<8x256xf32>
    %52 = vector.extract_strided_slice %34 {offsets = [0, 18], sizes = [8, 256], strides = [1, 1]} : vector<8x290xf32> to vector<8x256xf32>
    %cst_29 = arith.constant 0.000000e+00 : f32
    %53 = vector.shape_cast %30 : vector<1x256xi1> to vector<1x256xi1>
    %54 = vector.broadcast %53 : vector<1x256xi1> to vector<8x256xi1>
    %55 = vector.broadcast %cst_29 : f32 to vector<8x256xf32>
    %56 = arith.select %54, %52, %55 : vector<8x256xi1>, vector<8x256xf32>
    %57 = vector.extract_strided_slice %34 {offsets = [0, 32], sizes = [8, 256], strides = [1, 1]} : vector<8x290xf32> to vector<8x256xf32>
    %cst_30 = arith.constant 0.000000e+00 : f32
    %58 = vector.shape_cast %28 : vector<1x256xi1> to vector<1x256xi1>
    %59 = vector.broadcast %58 : vector<1x256xi1> to vector<8x256xi1>
    %60 = vector.broadcast %cst_30 : f32 to vector<8x256xf32>
    %61 = arith.select %59, %57, %60 : vector<8x256xi1>, vector<8x256xf32>
    %62 = vector.extract_strided_slice %34 {offsets = [0, 33], sizes = [8, 256], strides = [1, 1]} : vector<8x290xf32> to vector<8x256xf32>
    %63 = vector.extract_strided_slice %34 {offsets = [0, 34], sizes = [8, 256], strides = [1, 1]} : vector<8x290xf32> to vector<8x256xf32>
    %cst_31 = arith.constant 0.000000e+00 : f32
    %64 = vector.shape_cast %30 : vector<1x256xi1> to vector<1x256xi1>
    %65 = vector.broadcast %64 : vector<1x256xi1> to vector<8x256xi1>
    %66 = vector.broadcast %cst_31 : f32 to vector<8x256xf32>
    %67 = arith.select %65, %63, %66 : vector<8x256xi1>, vector<8x256xf32>
    %68 = tpu.concatenate %39, %40, %45, %50, %51, %56, %61, %62, %67 in 0 : vector<8x256xf32>, vector<8x256xf32>, vector<8x256xf32>, vector<8x256xf32>, vector<8x256xf32>, vector<8x256xf32>, vector<8x256xf32>, vector<8x256xf32>, vector<8x256xf32> -> vector<72x256xf32>
    %cst_32 = arith.constant dense<0.000000e+00> : vector<16x256xf32>
    %69 = tpu.matmul %0, %68, %cst_32 {dimension_numbers = #tpu.dot_dimension_numbers<[1], [0], [0], [1], [0, 0, 1, 1], [], []>} : vector<16x72xf32>, vector<72x256xf32>, vector<16x256xf32> -> vector<16x256xf32>
    %70 = vector.broadcast %1 : vector<16x1xf32> to vector<16x256xf32>
    %71 = arith.addf %69, %70 : vector<16x256xf32>
    %cst_33 = arith.constant 0.000000e+00 : f32
    %72 = vector.broadcast %cst_33 : f32 to vector<16x256xf32>
    %73 = arith.maximumf %71, %72 : vector<16x256xf32>
    %74 = vector.extract_strided_slice %73 {offsets = [0, 0], sizes = [8, 256], strides = [1, 1]} : vector<16x256xf32> to vector<8x256xf32>
    %75 = vector.extract_strided_slice %73 {offsets = [8, 0], sizes = [8, 256], strides = [1, 1]} : vector<16x256xf32> to vector<8x256xf32>
    %cst_34 = arith.constant 0.000000e+00 : f32
    %76 = vector.broadcast %cst_34 : f32 to vector<8x17xf32>
    %77 = tpu.concatenate %76, %74, %76 in 1 : vector<8x17xf32>, vector<8x256xf32>, vector<8x17xf32> -> vector<8x290xf32>
    %78 = vector.extract_strided_slice %77 {offsets = [0, 0], sizes = [8, 256], strides = [1, 1]} : vector<8x290xf32> to vector<8x256xf32>
    %cst_35 = arith.constant 0.000000e+00 : f32
    %79 = vector.shape_cast %28 : vector<1x256xi1> to vector<1x256xi1>
    %80 = vector.broadcast %79 : vector<1x256xi1> to vector<8x256xi1>
    %81 = vector.broadcast %cst_35 : f32 to vector<8x256xf32>
    %82 = arith.select %80, %78, %81 : vector<8x256xi1>, vector<8x256xf32>
    %83 = vector.extract_strided_slice %77 {offsets = [0, 1], sizes = [8, 256], strides = [1, 1]} : vector<8x290xf32> to vector<8x256xf32>
    %84 = vector.extract_strided_slice %77 {offsets = [0, 2], sizes = [8, 256], strides = [1, 1]} : vector<8x290xf32> to vector<8x256xf32>
    %cst_36 = arith.constant 0.000000e+00 : f32
    %85 = vector.shape_cast %30 : vector<1x256xi1> to vector<1x256xi1>
    %86 = vector.broadcast %85 : vector<1x256xi1> to vector<8x256xi1>
    %87 = vector.broadcast %cst_36 : f32 to vector<8x256xf32>
    %88 = arith.select %86, %84, %87 : vector<8x256xi1>, vector<8x256xf32>
    %89 = vector.extract_strided_slice %77 {offsets = [0, 16], sizes = [8, 256], strides = [1, 1]} : vector<8x290xf32> to vector<8x256xf32>
    %cst_37 = arith.constant 0.000000e+00 : f32
    %90 = vector.shape_cast %28 : vector<1x256xi1> to vector<1x256xi1>
    %91 = vector.broadcast %90 : vector<1x256xi1> to vector<8x256xi1>
    %92 = vector.broadcast %cst_37 : f32 to vector<8x256xf32>
    %93 = arith.select %91, %89, %92 : vector<8x256xi1>, vector<8x256xf32>
    %94 = vector.extract_strided_slice %77 {offsets = [0, 17], sizes = [8, 256], strides = [1, 1]} : vector<8x290xf32> to vector<8x256xf32>
    %95 = vector.extract_strided_slice %77 {offsets = [0, 18], sizes = [8, 256], strides = [1, 1]} : vector<8x290xf32> to vector<8x256xf32>
    %cst_38 = arith.constant 0.000000e+00 : f32
    %96 = vector.shape_cast %30 : vector<1x256xi1> to vector<1x256xi1>
    %97 = vector.broadcast %96 : vector<1x256xi1> to vector<8x256xi1>
    %98 = vector.broadcast %cst_38 : f32 to vector<8x256xf32>
    %99 = arith.select %97, %95, %98 : vector<8x256xi1>, vector<8x256xf32>
    %100 = vector.extract_strided_slice %77 {offsets = [0, 32], sizes = [8, 256], strides = [1, 1]} : vector<8x290xf32> to vector<8x256xf32>
    %cst_39 = arith.constant 0.000000e+00 : f32
    %101 = vector.shape_cast %28 : vector<1x256xi1> to vector<1x256xi1>
    %102 = vector.broadcast %101 : vector<1x256xi1> to vector<8x256xi1>
    %103 = vector.broadcast %cst_39 : f32 to vector<8x256xf32>
    %104 = arith.select %102, %100, %103 : vector<8x256xi1>, vector<8x256xf32>
    %105 = vector.extract_strided_slice %77 {offsets = [0, 33], sizes = [8, 256], strides = [1, 1]} : vector<8x290xf32> to vector<8x256xf32>
    %106 = vector.extract_strided_slice %77 {offsets = [0, 34], sizes = [8, 256], strides = [1, 1]} : vector<8x290xf32> to vector<8x256xf32>
    %cst_40 = arith.constant 0.000000e+00 : f32
    %107 = vector.shape_cast %30 : vector<1x256xi1> to vector<1x256xi1>
    %108 = vector.broadcast %107 : vector<1x256xi1> to vector<8x256xi1>
    %109 = vector.broadcast %cst_40 : f32 to vector<8x256xf32>
    %110 = arith.select %108, %106, %109 : vector<8x256xi1>, vector<8x256xf32>
    %111 = tpu.concatenate %82, %83, %88, %93, %94, %99, %104, %105, %110 in 0 : vector<8x256xf32>, vector<8x256xf32>, vector<8x256xf32>, vector<8x256xf32>, vector<8x256xf32>, vector<8x256xf32>, vector<8x256xf32>, vector<8x256xf32>, vector<8x256xf32> -> vector<72x256xf32>
    %cst_41 = arith.constant dense<0.000000e+00> : vector<8x256xf32>
    %112 = tpu.matmul %2, %111, %cst_41 {dimension_numbers = #tpu.dot_dimension_numbers<[1], [0], [0], [1], [0, 0, 1, 1], [], []>} : vector<8x72xf32>, vector<72x256xf32>, vector<8x256xf32> -> vector<8x256xf32>
    %113 = vector.broadcast %3 : vector<8x1xf32> to vector<8x256xf32>
    %114 = arith.addf %112, %113 : vector<8x256xf32>
    %cst_42 = arith.constant 0.000000e+00 : f32
    %115 = vector.broadcast %cst_42 : f32 to vector<8x256xf32>
    %116 = arith.maximumf %114, %115 : vector<8x256xf32>
    %cst_43 = arith.constant 0.000000e+00 : f32
    %117 = vector.broadcast %cst_43 : f32 to vector<8x17xf32>
    %118 = tpu.concatenate %117, %75, %117 in 1 : vector<8x17xf32>, vector<8x256xf32>, vector<8x17xf32> -> vector<8x290xf32>
    %119 = vector.extract_strided_slice %118 {offsets = [0, 0], sizes = [8, 256], strides = [1, 1]} : vector<8x290xf32> to vector<8x256xf32>
    %cst_44 = arith.constant 0.000000e+00 : f32
    %120 = vector.shape_cast %28 : vector<1x256xi1> to vector<1x256xi1>
    %121 = vector.broadcast %120 : vector<1x256xi1> to vector<8x256xi1>
    %122 = vector.broadcast %cst_44 : f32 to vector<8x256xf32>
    %123 = arith.select %121, %119, %122 : vector<8x256xi1>, vector<8x256xf32>
    %124 = vector.extract_strided_slice %118 {offsets = [0, 1], sizes = [8, 256], strides = [1, 1]} : vector<8x290xf32> to vector<8x256xf32>
    %125 = vector.extract_strided_slice %118 {offsets = [0, 2], sizes = [8, 256], strides = [1, 1]} : vector<8x290xf32> to vector<8x256xf32>
    %cst_45 = arith.constant 0.000000e+00 : f32
    %126 = vector.shape_cast %30 : vector<1x256xi1> to vector<1x256xi1>
    %127 = vector.broadcast %126 : vector<1x256xi1> to vector<8x256xi1>
    %128 = vector.broadcast %cst_45 : f32 to vector<8x256xf32>
    %129 = arith.select %127, %125, %128 : vector<8x256xi1>, vector<8x256xf32>
    %130 = vector.extract_strided_slice %118 {offsets = [0, 16], sizes = [8, 256], strides = [1, 1]} : vector<8x290xf32> to vector<8x256xf32>
    %cst_46 = arith.constant 0.000000e+00 : f32
    %131 = vector.shape_cast %28 : vector<1x256xi1> to vector<1x256xi1>
    %132 = vector.broadcast %131 : vector<1x256xi1> to vector<8x256xi1>
    %133 = vector.broadcast %cst_46 : f32 to vector<8x256xf32>
    %134 = arith.select %132, %130, %133 : vector<8x256xi1>, vector<8x256xf32>
    %135 = vector.extract_strided_slice %118 {offsets = [0, 17], sizes = [8, 256], strides = [1, 1]} : vector<8x290xf32> to vector<8x256xf32>
    %136 = vector.extract_strided_slice %118 {offsets = [0, 18], sizes = [8, 256], strides = [1, 1]} : vector<8x290xf32> to vector<8x256xf32>
    %cst_47 = arith.constant 0.000000e+00 : f32
    %137 = vector.shape_cast %30 : vector<1x256xi1> to vector<1x256xi1>
    %138 = vector.broadcast %137 : vector<1x256xi1> to vector<8x256xi1>
    %139 = vector.broadcast %cst_47 : f32 to vector<8x256xf32>
    %140 = arith.select %138, %136, %139 : vector<8x256xi1>, vector<8x256xf32>
    %141 = vector.extract_strided_slice %118 {offsets = [0, 32], sizes = [8, 256], strides = [1, 1]} : vector<8x290xf32> to vector<8x256xf32>
    %cst_48 = arith.constant 0.000000e+00 : f32
    %142 = vector.shape_cast %28 : vector<1x256xi1> to vector<1x256xi1>
    %143 = vector.broadcast %142 : vector<1x256xi1> to vector<8x256xi1>
    %144 = vector.broadcast %cst_48 : f32 to vector<8x256xf32>
    %145 = arith.select %143, %141, %144 : vector<8x256xi1>, vector<8x256xf32>
    %146 = vector.extract_strided_slice %118 {offsets = [0, 33], sizes = [8, 256], strides = [1, 1]} : vector<8x290xf32> to vector<8x256xf32>
    %147 = vector.extract_strided_slice %118 {offsets = [0, 34], sizes = [8, 256], strides = [1, 1]} : vector<8x290xf32> to vector<8x256xf32>
    %cst_49 = arith.constant 0.000000e+00 : f32
    %148 = vector.shape_cast %30 : vector<1x256xi1> to vector<1x256xi1>
    %149 = vector.broadcast %148 : vector<1x256xi1> to vector<8x256xi1>
    %150 = vector.broadcast %cst_49 : f32 to vector<8x256xf32>
    %151 = arith.select %149, %147, %150 : vector<8x256xi1>, vector<8x256xf32>
    %152 = tpu.concatenate %123, %124, %129, %134, %135, %140, %145, %146, %151 in 0 : vector<8x256xf32>, vector<8x256xf32>, vector<8x256xf32>, vector<8x256xf32>, vector<8x256xf32>, vector<8x256xf32>, vector<8x256xf32>, vector<8x256xf32>, vector<8x256xf32> -> vector<72x256xf32>
    %cst_50 = arith.constant dense<0.000000e+00> : vector<8x256xf32>
    %153 = tpu.matmul %4, %152, %cst_50 {dimension_numbers = #tpu.dot_dimension_numbers<[1], [0], [0], [1], [0, 0, 1, 1], [], []>} : vector<8x72xf32>, vector<72x256xf32>, vector<8x256xf32> -> vector<8x256xf32>
    %154 = vector.broadcast %5 : vector<8x1xf32> to vector<8x256xf32>
    %155 = arith.addf %153, %154 : vector<8x256xf32>
    %cst_51 = arith.constant 0.000000e+00 : f32
    %156 = vector.broadcast %cst_51 : f32 to vector<8x256xf32>
    %157 = arith.maximumf %155, %156 : vector<8x256xf32>
    %cst_52 = arith.constant 0.000000e+00 : f32
    %158 = vector.broadcast %cst_52 : f32 to vector<8x17xf32>
    %159 = tpu.concatenate %158, %116, %158 in 1 : vector<8x17xf32>, vector<8x256xf32>, vector<8x17xf32> -> vector<8x290xf32>
    %160 = vector.extract_strided_slice %159 {offsets = [0, 0], sizes = [8, 256], strides = [1, 1]} : vector<8x290xf32> to vector<8x256xf32>
    %cst_53 = arith.constant 0.000000e+00 : f32
    %161 = vector.shape_cast %28 : vector<1x256xi1> to vector<1x256xi1>
    %162 = vector.broadcast %161 : vector<1x256xi1> to vector<8x256xi1>
    %163 = vector.broadcast %cst_53 : f32 to vector<8x256xf32>
    %164 = arith.select %162, %160, %163 : vector<8x256xi1>, vector<8x256xf32>
    %165 = vector.extract_strided_slice %159 {offsets = [0, 1], sizes = [8, 256], strides = [1, 1]} : vector<8x290xf32> to vector<8x256xf32>
    %166 = vector.extract_strided_slice %159 {offsets = [0, 2], sizes = [8, 256], strides = [1, 1]} : vector<8x290xf32> to vector<8x256xf32>
    %cst_54 = arith.constant 0.000000e+00 : f32
    %167 = vector.shape_cast %30 : vector<1x256xi1> to vector<1x256xi1>
    %168 = vector.broadcast %167 : vector<1x256xi1> to vector<8x256xi1>
    %169 = vector.broadcast %cst_54 : f32 to vector<8x256xf32>
    %170 = arith.select %168, %166, %169 : vector<8x256xi1>, vector<8x256xf32>
    %171 = vector.extract_strided_slice %159 {offsets = [0, 16], sizes = [8, 256], strides = [1, 1]} : vector<8x290xf32> to vector<8x256xf32>
    %cst_55 = arith.constant 0.000000e+00 : f32
    %172 = vector.shape_cast %28 : vector<1x256xi1> to vector<1x256xi1>
    %173 = vector.broadcast %172 : vector<1x256xi1> to vector<8x256xi1>
    %174 = vector.broadcast %cst_55 : f32 to vector<8x256xf32>
    %175 = arith.select %173, %171, %174 : vector<8x256xi1>, vector<8x256xf32>
    %176 = vector.extract_strided_slice %159 {offsets = [0, 17], sizes = [8, 256], strides = [1, 1]} : vector<8x290xf32> to vector<8x256xf32>
    %177 = vector.extract_strided_slice %159 {offsets = [0, 18], sizes = [8, 256], strides = [1, 1]} : vector<8x290xf32> to vector<8x256xf32>
    %cst_56 = arith.constant 0.000000e+00 : f32
    %178 = vector.shape_cast %30 : vector<1x256xi1> to vector<1x256xi1>
    %179 = vector.broadcast %178 : vector<1x256xi1> to vector<8x256xi1>
    %180 = vector.broadcast %cst_56 : f32 to vector<8x256xf32>
    %181 = arith.select %179, %177, %180 : vector<8x256xi1>, vector<8x256xf32>
    %182 = vector.extract_strided_slice %159 {offsets = [0, 32], sizes = [8, 256], strides = [1, 1]} : vector<8x290xf32> to vector<8x256xf32>
    %cst_57 = arith.constant 0.000000e+00 : f32
    %183 = vector.shape_cast %28 : vector<1x256xi1> to vector<1x256xi1>
    %184 = vector.broadcast %183 : vector<1x256xi1> to vector<8x256xi1>
    %185 = vector.broadcast %cst_57 : f32 to vector<8x256xf32>
    %186 = arith.select %184, %182, %185 : vector<8x256xi1>, vector<8x256xf32>
    %187 = vector.extract_strided_slice %159 {offsets = [0, 33], sizes = [8, 256], strides = [1, 1]} : vector<8x290xf32> to vector<8x256xf32>
    %188 = vector.extract_strided_slice %159 {offsets = [0, 34], sizes = [8, 256], strides = [1, 1]} : vector<8x290xf32> to vector<8x256xf32>
    %cst_58 = arith.constant 0.000000e+00 : f32
    %189 = vector.shape_cast %30 : vector<1x256xi1> to vector<1x256xi1>
    %190 = vector.broadcast %189 : vector<1x256xi1> to vector<8x256xi1>
    %191 = vector.broadcast %cst_58 : f32 to vector<8x256xf32>
    %192 = arith.select %190, %188, %191 : vector<8x256xi1>, vector<8x256xf32>
    %193 = tpu.concatenate %164, %165, %170, %175, %176, %181, %186, %187, %192 in 0 : vector<8x256xf32>, vector<8x256xf32>, vector<8x256xf32>, vector<8x256xf32>, vector<8x256xf32>, vector<8x256xf32>, vector<8x256xf32>, vector<8x256xf32>, vector<8x256xf32> -> vector<72x256xf32>
    %cst_59 = arith.constant dense<0.000000e+00> : vector<4x256xf32>
    %194 = tpu.matmul %6, %193, %cst_59 {dimension_numbers = #tpu.dot_dimension_numbers<[1], [0], [0], [1], [0, 0, 1, 1], [], []>} : vector<4x72xf32>, vector<72x256xf32>, vector<4x256xf32> -> vector<4x256xf32>
    %195 = vector.broadcast %7 : vector<4x1xf32> to vector<4x256xf32>
    %196 = arith.addf %194, %195 : vector<4x256xf32>
    %c0_60 = arith.constant 0 : index
    %c0_61 = arith.constant 0 : index
    %c0_62 = arith.constant 0 : index
    %197 = vector.load %arg12[%c0_60, %c0_61, %c0_62] : memref<1x4x256xf32, #tpu.memory_space<vmem>>, vector<1x4x256xf32>
    %198 = vector.shape_cast %197 : vector<1x4x256xf32> to vector<4x256xf32>
    %199 = vector.shape_cast %196 : vector<4x256xf32> to vector<1x4x256xf32>
    tpu.vector_store %arg12[%c0_60, %c0_61, %c0_62], %199 {strides = array<i32>} : memref<1x4x256xf32, #tpu.memory_space<vmem>>, vector<1x4x256xf32>,
    %cst_63 = arith.constant 0.000000e+00 : f32
    %200 = vector.broadcast %cst_63 : f32 to vector<8x17xf32>
    %201 = tpu.concatenate %200, %157, %200 in 1 : vector<8x17xf32>, vector<8x256xf32>, vector<8x17xf32> -> vector<8x290xf32>
    %202 = vector.extract_strided_slice %201 {offsets = [0, 0], sizes = [8, 256], strides = [1, 1]} : vector<8x290xf32> to vector<8x256xf32>
    %cst_64 = arith.constant 0.000000e+00 : f32
    %203 = vector.shape_cast %28 : vector<1x256xi1> to vector<1x256xi1>
    %204 = vector.broadcast %203 : vector<1x256xi1> to vector<8x256xi1>
    %205 = vector.broadcast %cst_64 : f32 to vector<8x256xf32>
    %206 = arith.select %204, %202, %205 : vector<8x256xi1>, vector<8x256xf32>
    %207 = vector.extract_strided_slice %201 {offsets = [0, 1], sizes = [8, 256], strides = [1, 1]} : vector<8x290xf32> to vector<8x256xf32>
    %208 = vector.extract_strided_slice %201 {offsets = [0, 2], sizes = [8, 256], strides = [1, 1]} : vector<8x290xf32> to vector<8x256xf32>
    %cst_65 = arith.constant 0.000000e+00 : f32
    %209 = vector.shape_cast %30 : vector<1x256xi1> to vector<1x256xi1>
    %210 = vector.broadcast %209 : vector<1x256xi1> to vector<8x256xi1>
    %211 = vector.broadcast %cst_65 : f32 to vector<8x256xf32>
    %212 = arith.select %210, %208, %211 : vector<8x256xi1>, vector<8x256xf32>
    %213 = vector.extract_strided_slice %201 {offsets = [0, 16], sizes = [8, 256], strides = [1, 1]} : vector<8x290xf32> to vector<8x256xf32>
    %cst_66 = arith.constant 0.000000e+00 : f32
    %214 = vector.shape_cast %28 : vector<1x256xi1> to vector<1x256xi1>
    %215 = vector.broadcast %214 : vector<1x256xi1> to vector<8x256xi1>
    %216 = vector.broadcast %cst_66 : f32 to vector<8x256xf32>
    %217 = arith.select %215, %213, %216 : vector<8x256xi1>, vector<8x256xf32>
    %218 = vector.extract_strided_slice %201 {offsets = [0, 17], sizes = [8, 256], strides = [1, 1]} : vector<8x290xf32> to vector<8x256xf32>
    %219 = vector.extract_strided_slice %201 {offsets = [0, 18], sizes = [8, 256], strides = [1, 1]} : vector<8x290xf32> to vector<8x256xf32>
    %cst_67 = arith.constant 0.000000e+00 : f32
    %220 = vector.shape_cast %30 : vector<1x256xi1> to vector<1x256xi1>
    %221 = vector.broadcast %220 : vector<1x256xi1> to vector<8x256xi1>
    %222 = vector.broadcast %cst_67 : f32 to vector<8x256xf32>
    %223 = arith.select %221, %219, %222 : vector<8x256xi1>, vector<8x256xf32>
    %224 = vector.extract_strided_slice %201 {offsets = [0, 32], sizes = [8, 256], strides = [1, 1]} : vector<8x290xf32> to vector<8x256xf32>
    %cst_68 = arith.constant 0.000000e+00 : f32
    %225 = vector.shape_cast %28 : vector<1x256xi1> to vector<1x256xi1>
    %226 = vector.broadcast %225 : vector<1x256xi1> to vector<8x256xi1>
    %227 = vector.broadcast %cst_68 : f32 to vector<8x256xf32>
    %228 = arith.select %226, %224, %227 : vector<8x256xi1>, vector<8x256xf32>
    %229 = vector.extract_strided_slice %201 {offsets = [0, 33], sizes = [8, 256], strides = [1, 1]} : vector<8x290xf32> to vector<8x256xf32>
    %230 = vector.extract_strided_slice %201 {offsets = [0, 34], sizes = [8, 256], strides = [1, 1]} : vector<8x290xf32> to vector<8x256xf32>
    %cst_69 = arith.constant 0.000000e+00 : f32
    %231 = vector.shape_cast %30 : vector<1x256xi1> to vector<1x256xi1>
    %232 = vector.broadcast %231 : vector<1x256xi1> to vector<8x256xi1>
    %233 = vector.broadcast %cst_69 : f32 to vector<8x256xf32>
    %234 = arith.select %232, %230, %233 : vector<8x256xi1>, vector<8x256xf32>
    %235 = tpu.concatenate %206, %207, %212, %217, %218, %223, %228, %229, %234 in 0 : vector<8x256xf32>, vector<8x256xf32>, vector<8x256xf32>, vector<8x256xf32>, vector<8x256xf32>, vector<8x256xf32>, vector<8x256xf32>, vector<8x256xf32>, vector<8x256xf32> -> vector<72x256xf32>
    %cst_70 = arith.constant dense<0.000000e+00> : vector<8x256xf32>
    %236 = tpu.matmul %8, %235, %cst_70 {dimension_numbers = #tpu.dot_dimension_numbers<[1], [0], [0], [1], [0, 0, 1, 1], [], []>} : vector<8x72xf32>, vector<72x256xf32>, vector<8x256xf32> -> vector<8x256xf32>
    %237 = vector.broadcast %9 : vector<8x1xf32> to vector<8x256xf32>
    %238 = arith.addf %236, %237 : vector<8x256xf32>
    %c0_71 = arith.constant 0 : index
    %c0_72 = arith.constant 0 : index
    %c0_73 = arith.constant 0 : index
    %239 = vector.load %arg13[%c0_71, %c0_72, %c0_73] : memref<1x8x256xf32, #tpu.memory_space<vmem>>, vector<1x8x256xf32>
    %240 = vector.shape_cast %239 : vector<1x8x256xf32> to vector<8x256xf32>
    %241 = vector.shape_cast %238 : vector<8x256xf32> to vector<1x8x256xf32>
    tpu.vector_store %arg13[%c0_71, %c0_72, %c0_73], %241 {strides = array<i32>} : memref<1x8x256xf32, #tpu.memory_space<vmem>>, vector<1x8x256xf32>,
    return
  }
  func.func @transform_0(%arg0: i32) -> (i32, i32, i32) {
    %c0_i32 = arith.constant 0 : i32
    %c0_i32_0 = arith.constant 0 : i32
    %c0_i32_1 = arith.constant 0 : i32
    return %arg0, %c0_i32, %c0_i32_0 : i32, i32, i32
  }
  func.func @transform_1(%arg0: i32) -> (i32, i32) {
    %c0_i32 = arith.constant 0 : i32
    %c0_i32_0 = arith.constant 0 : i32
    %c0_i32_1 = arith.constant 0 : i32
    return %c0_i32, %c0_i32_0 : i32, i32
  }
  func.func @transform_2(%arg0: i32) -> (i32, i32) {
    %c0_i32 = arith.constant 0 : i32
    %c0_i32_0 = arith.constant 0 : i32
    %c0_i32_1 = arith.constant 0 : i32
    return %c0_i32, %c0_i32_0 : i32, i32
  }
  func.func @transform_3(%arg0: i32) -> (i32, i32) {
    %c0_i32 = arith.constant 0 : i32
    %c0_i32_0 = arith.constant 0 : i32
    %c0_i32_1 = arith.constant 0 : i32
    return %c0_i32, %c0_i32_0 : i32, i32
  }
  func.func @transform_4(%arg0: i32) -> (i32, i32) {
    %c0_i32 = arith.constant 0 : i32
    %c0_i32_0 = arith.constant 0 : i32
    %c0_i32_1 = arith.constant 0 : i32
    return %c0_i32, %c0_i32_0 : i32, i32
  }
  func.func @transform_5(%arg0: i32) -> (i32, i32) {
    %c0_i32 = arith.constant 0 : i32
    %c0_i32_0 = arith.constant 0 : i32
    %c0_i32_1 = arith.constant 0 : i32
    return %c0_i32, %c0_i32_0 : i32, i32
  }
  func.func @transform_6(%arg0: i32) -> (i32, i32) {
    %c0_i32 = arith.constant 0 : i32
    %c0_i32_0 = arith.constant 0 : i32
    %c0_i32_1 = arith.constant 0 : i32
    return %c0_i32, %c0_i32_0 : i32, i32
  }
  func.func @transform_7(%arg0: i32) -> (i32, i32) {
    %c0_i32 = arith.constant 0 : i32
    %c0_i32_0 = arith.constant 0 : i32
    %c0_i32_1 = arith.constant 0 : i32
    return %c0_i32, %c0_i32_0 : i32, i32
  }
  func.func @transform_8(%arg0: i32) -> (i32, i32) {
    %c0_i32 = arith.constant 0 : i32
    %c0_i32_0 = arith.constant 0 : i32
    %c0_i32_1 = arith.constant 0 : i32
    return %c0_i32, %c0_i32_0 : i32, i32
  }
  func.func @transform_9(%arg0: i32) -> (i32, i32) {
    %c0_i32 = arith.constant 0 : i32
    %c0_i32_0 = arith.constant 0 : i32
    %c0_i32_1 = arith.constant 0 : i32
    return %c0_i32, %c0_i32_0 : i32, i32
  }
  func.func @transform_10(%arg0: i32) -> (i32, i32) {
    %c0_i32 = arith.constant 0 : i32
    %c0_i32_0 = arith.constant 0 : i32
    %c0_i32_1 = arith.constant 0 : i32
    return %c0_i32, %c0_i32_0 : i32, i32
  }
  func.func @transform_11(%arg0: i32) -> (i32, i32, i32) {
    %c0_i32 = arith.constant 0 : i32
    %c0_i32_0 = arith.constant 0 : i32
    %c0_i32_1 = arith.constant 0 : i32
    return %arg0, %c0_i32, %c0_i32_0 : i32, i32, i32
  }
  func.func @transform_12(%arg0: i32) -> (i32, i32, i32) {
    %c0_i32 = arith.constant 0 : i32
    %c0_i32_0 = arith.constant 0 : i32
    %c0_i32_1 = arith.constant 0 : i32
    return %arg0, %c0_i32, %c0_i32_0 : i32, i32, i32
  }
}

</mosaic_0001>

<llo_original>
// kernel: _head_forward.1
$region0: #{_head_forward.1}
  #allocation0 [shape = 'u32[]', space=smem, size = 0x4, offset = 0x4, fixed_abs, tag = 'smem constant byte address 0x4 - core index']
  #allocation1 [shape = 'u32[144,128]{1,0:T(1,128)}', space=vmem, size = 0x12000, scoped, tag = 'internal scratch']
  %s0 = inlined_call_operand.vmem [shape: f32[2,8,256], index: 0, kind: input, shape index: {}]
  %s1 = inlined_call_operand.vmem [shape: f32[16,72], index: 1, kind: input, shape index: {}]
  %s2 = inlined_call_operand.vmem [shape: f32[16,1], index: 2, kind: input, shape index: {}]
  %s3 = inlined_call_operand.vmem [shape: f32[8,72], index: 3, kind: input, shape index: {}]
  %s4 = inlined_call_operand.vmem [shape: f32[8,1], index: 4, kind: input, shape index: {}]
  %s5 = inlined_call_operand.vmem [shape: f32[8,72], index: 5, kind: input, shape index: {}]
  %s6 = inlined_call_operand.vmem [shape: f32[8,1], index: 6, kind: input, shape index: {}]
  %s7 = inlined_call_operand.vmem [shape: f32[4,72], index: 7, kind: input, shape index: {}]
  %s8 = inlined_call_operand.vmem [shape: f32[4,1], index: 8, kind: input, shape index: {}]
  %s9 = inlined_call_operand.vmem [shape: f32[8,72], index: 9, kind: input, shape index: {}]
  %s10 = inlined_call_operand.vmem [shape: f32[8,1], index: 10, kind: input, shape index: {}]
  %s11 = inlined_call_operand.vmem [shape: f32[2,4,256], index: 11, kind: output, shape index: {0}]
  %s12 = inlined_call_operand.vmem [shape: f32[2,8,256], index: 12, kind: output, shape index: {1}]
  %13 = xla_tuple %s11, %s12
  %s14 = sld [smem:[#allocation0]]
  $region85: #{_head_forward.1} parent=0
    _
  %s16 = ssub.s32 1, %s14
  %s17 = scalar_select 0, %s16, %s14
  loop: start=0, step=1, limit=4
  $region2: #{_head_forward.1} parent=0 // loop_pre_header
    _
  $region3: #{_head_forward.1} parent=0 // loop_header
    %s19 = sphi 0, %s23
    %p20 = scmp.ge.s32.totalorder %s19, 4
    %s29 = sphi 0, %s31
    %s32 = sphi 0, %s29
    %s33 = sphi 0, %s32
    %s49 = sphi 0, %s33
    %s53 = sphi 0, %s53
    %s55 = sphi 0, %s53
    %s56 = sphi 0, %s55
    %s70 = sphi 0, %s56
    %s74 = sphi 0, %s74
    %s76 = sphi 0, %s74
    %s77 = sphi 0, %s76
    %s91 = sphi 0, %s77
    %s95 = sphi 0, %s95
    %s97 = sphi 0, %s95
    %s98 = sphi 0, %s97
    %s112 = sphi 0, %s98
    %s116 = sphi 0, %s116
    %s118 = sphi 0, %s116
    %s119 = sphi 0, %s118
    %s133 = sphi 0, %s119
    %s137 = sphi 0, %s137
    %s139 = sphi 0, %s137
    %s140 = sphi 0, %s139
    %s154 = sphi 0, %s140
    %s158 = sphi 0, %s158
    %s160 = sphi 0, %s158
    %s161 = sphi 0, %s160
    %s175 = sphi 0, %s161
    %s179 = sphi 0, %s179
    %s181 = sphi 0, %s179
    %s182 = sphi 0, %s181
    %s196 = sphi 0, %s182
    %s200 = sphi 0, %s200
    %s202 = sphi 0, %s200
    %s203 = sphi 0, %s202
    %s217 = sphi 0, %s203
    %s221 = sphi 0, %s221
    %s223 = sphi 0, %s221
    %s224 = sphi 0, %s223
    %s238 = sphi 0, %s224
    %s242 = sphi 0, %s242
    %s244 = sphi 0, %s242
    %s245 = sphi 0, %s244
    %s259 = sphi 0, %s245
    %s265 = sphi 0, %s267
    %s268 = sphi 0, %s265
    %s269 = sphi 0, %s268
    %s285 = sphi 0, %s269
    %s291 = sphi 0, %s293
    %s294 = sphi 0, %s291
    %s295 = sphi 0, %s294
    %s311 = sphi 0, %s295
  $region4: #{_head_forward.1} parent=0 // loop_header_branch
    %22 = sbr.rel (%p20) target = $region8
  $region5: #{_head_forward.1} parent=0 // loop_body
    %s24 = ssub.s32 %s19, 1
    %s25 = ssub.s32 %s19, 2
    %s26 = sadd.s32 %s19, 1
    %s27 = ssub.s32 %s19, %s26
    %p28 = scmp.eq.s32.totalorder %s27, 0
    %s30 = sadd.s32 %s29, 1
    %s31 = scalar_select %p28, %s29, %s30
    %p34 = pneg %p28
    %p35 = scmp.eq.s32.totalorder %s19, 1
    %p36 = por %p34, %p35
    %p37 = scmp.ne.s32.totalorder %s29, %s32
    %p38 = scmp.eq.s32.totalorder %s19, 0
    %p39 = por %p37, %p38
    %p40 = scmp.ne.s32.totalorder %s29, %s32
    %p41 = scmp.eq.s32.totalorder %s24, 1
    %p42 = por %p40, %p41
    %p43 = scmp.ne.s32.totalorder %s32, %s33
    %p44 = scmp.eq.s32.totalorder %s24, 0
    %p45 = por %p43, %p44
    %p46 = scmp.ne.s32.totalorder %s32, %s33
    %p47 = scmp.eq.s32.totalorder %s25, 1
    %p48 = por %p46, %p47
    %p50 = scmp.ne.s32.totalorder %s33, %s49
    %p51 = scmp.eq.s32.totalorder %s25, 0
    %p52 = por %p50, %p51
    %s54 = sadd.s32 %s53, 1
    %p57 = scmp.eq.s32.totalorder %s19, 1
    %p58 = scmp.ne.s32.totalorder %s53, %s55
    %p59 = scmp.eq.s32.totalorder %s19, 0
    %p60 = por %p58, %p59
    %p61 = scmp.ne.s32.totalorder %s53, %s55
    %p62 = scmp.eq.s32.totalorder %s24, 1
    %p63 = por %p61, %p62
    %p64 = scmp.ne.s32.totalorder %s55, %s56
    %p65 = scmp.eq.s32.totalorder %s24, 0
    %p66 = por %p64, %p65
    %p67 = scmp.ne.s32.totalorder %s55, %s56
    %p68 = scmp.eq.s32.totalorder %s25, 1
    %p69 = por %p67, %p68
    %p71 = scmp.ne.s32.totalorder %s56, %s70
    %p72 = scmp.eq.s32.totalorder %s25, 0
    %p73 = por %p71, %p72
    %s75 = sadd.s32 %s74, 1
    %p78 = scmp.eq.s32.totalorder %s19, 1
    %p79 = scmp.ne.s32.totalorder %s74, %s76
    %p80 = scmp.eq.s32.totalorder %s19, 0
    %p81 = por %p79, %p80
    %p82 = scmp.ne.s32.totalorder %s74, %s76
    %p83 = scmp.eq.s32.totalorder %s24, 1
    %p84 = por %p82, %p83
    %p85 = scmp.ne.s32.totalorder %s76, %s77
    %p86 = scmp.eq.s32.totalorder %s24, 0
    %p87 = por %p85, %p86
    %p88 = scmp.ne.s32.totalorder %s76, %s77
    %p89 = scmp.eq.s32.totalorder %s25, 1
    %p90 = por %p88, %p89
    %p92 = scmp.ne.s32.totalorder %s77, %s91
    %p93 = scmp.eq.s32.totalorder %s25, 0
    %p94 = por %p92, %p93
    %s96 = sadd.s32 %s95, 1
    %p99 = scmp.eq.s32.totalorder %s19, 1
    %p100 = scmp.ne.s32.totalorder %s95, %s97
    %p101 = scmp.eq.s32.totalorder %s19, 0
    %p102 = por %p100, %p101
    %p103 = scmp.ne.s32.totalorder %s95, %s97
    %p104 = scmp.eq.s32.totalorder %s24, 1
    %p105 = por %p103, %p104
    %p106 = scmp.ne.s32.totalorder %s97, %s98
    %p107 = scmp.eq.s32.totalorder %s24, 0
    %p108 = por %p106, %p107
    %p109 = scmp.ne.s32.totalorder %s97, %s98
    %p110 = scmp.eq.s32.totalorder %s25, 1
    %p111 = por %p109, %p110
    %p113 = scmp.ne.s32.totalorder %s98, %s112
    %p114 = scmp.eq.s32.totalorder %s25, 0
    %p115 = por %p113, %p114
    %s117 = sadd.s32 %s116, 1
    %p120 = scmp.eq.s32.totalorder %s19, 1
    %p121 = scmp.ne.s32.totalorder %s116, %s118
    %p122 = scmp.eq.s32.totalorder %s19, 0
    %p123 = por %p121, %p122
    %p124 = scmp.ne.s32.totalorder %s116, %s118
    %p125 = scmp.eq.s32.totalorder %s24, 1
    %p126 = por %p124, %p125
    %p127 = scmp.ne.s32.totalorder %s118, %s119
    %p128 = scmp.eq.s32.totalorder %s24, 0
    %p129 = por %p127, %p128
    %p130 = scmp.ne.s32.totalorder %s118, %s119
    %p131 = scmp.eq.s32.totalorder %s25, 1
    %p132 = por %p130, %p131
    %p134 = scmp.ne.s32.totalorder %s119, %s133
    %p135 = scmp.eq.s32.totalorder %s25, 0
    %p136 = por %p134, %p135
    %s138 = sadd.s32 %s137, 1
    %p141 = scmp.eq.s32.totalorder %s19, 1
    %p142 = scmp.ne.s32.totalorder %s137, %s139
    %p143 = scmp.eq.s32.totalorder %s19, 0
    %p144 = por %p142, %p143
    %p145 = scmp.ne.s32.totalorder %s137, %s139
    %p146 = scmp.eq.s32.totalorder %s24, 1
    %p147 = por %p145, %p146
    %p148 = scmp.ne.s32.totalorder %s139, %s140
    %p149 = scmp.eq.s32.totalorder %s24, 0
    %p150 = por %p148, %p149
    %p151 = scmp.ne.s32.totalorder %s139, %s140
    %p152 = scmp.eq.s32.totalorder %s25, 1
    %p153 = por %p151, %p152
    %p155 = scmp.ne.s32.totalorder %s140, %s154
    %p156 = scmp.eq.s32.totalorder %s25, 0
    %p157 = por %p155, %p156
    %s159 = sadd.s32 %s158, 1
    %p162 = scmp.eq.s32.totalorder %s19, 1
    %p163 = scmp.ne.s32.totalorder %s158, %s160
    %p164 = scmp.eq.s32.totalorder %s19, 0
    %p165 = por %p163, %p164
    %p166 = scmp.ne.s32.totalorder %s158, %s160
    %p167 = scmp.eq.s32.totalorder %s24, 1
    %p168 = por %p166, %p167
    %p169 = scmp.ne.s32.totalorder %s160, %s161
    %p170 = scmp.eq.s32.totalorder %s24, 0
    %p171 = por %p169, %p170
    %p172 = scmp.ne.s32.totalorder %s160, %s161
    %p173 = scmp.eq.s32.totalorder %s25, 1
    %p174 = por %p172, %p173
    %p176 = scmp.ne.s32.totalorder %s161, %s175
    %p177 = scmp.eq.s32.totalorder %s25, 0
    %p178 = por %p176, %p177
    %s180 = sadd.s32 %s179, 1
    %p183 = scmp.eq.s32.totalorder %s19, 1
    %p184 = scmp.ne.s32.totalorder %s179, %s181
    %p185 = scmp.eq.s32.totalorder %s19, 0
    %p186 = por %p184, %p185
    %p187 = scmp.ne.s32.totalorder %s179, %s181
    %p188 = scmp.eq.s32.totalorder %s24, 1
    %p189 = por %p187, %p188
    %p190 = scmp.ne.s32.totalorder %s181, %s182
    %p191 = scmp.eq.s32.totalorder %s24, 0
    %p192 = por %p190, %p191
    %p193 = scmp.ne.s32.totalorder %s181, %s182
    %p194 = scmp.eq.s32.totalorder %s25, 1
    %p195 = por %p193, %p194
    %p197 = scmp.ne.s32.totalorder %s182, %s196
    %p198 = scmp.eq.s32.totalorder %s25, 0
    %p199 = por %p197, %p198
    %s201 = sadd.s32 %s200, 1
    %p204 = scmp.eq.s32.totalorder %s19, 1
    %p205 = scmp.ne.s32.totalorder %s200, %s202
    %p206 = scmp.eq.s32.totalorder %s19, 0
    %p207 = por %p205, %p206
    %p208 = scmp.ne.s32.totalorder %s200, %s202
    %p209 = scmp.eq.s32.totalorder %s24, 1
    %p210 = por %p208, %p209
    %p211 = scmp.ne.s32.totalorder %s202, %s203
    %p212 = scmp.eq.s32.totalorder %s24, 0
    %p213 = por %p211, %p212
    %p214 = scmp.ne.s32.totalorder %s202, %s203
    %p215 = scmp.eq.s32.totalorder %s25, 1
    %p216 = por %p214, %p215
    %p218 = scmp.ne.s32.totalorder %s203, %s217
    %p219 = scmp.eq.s32.totalorder %s25, 0
    %p220 = por %p218, %p219
    %s222 = sadd.s32 %s221, 1
    %p225 = scmp.eq.s32.totalorder %s19, 1
    %p226 = scmp.ne.s32.totalorder %s221, %s223
    %p227 = scmp.eq.s32.totalorder %s19, 0
    %p228 = por %p226, %p227
    %p229 = scmp.ne.s32.totalorder %s221, %s223
    %p230 = scmp.eq.s32.totalorder %s24, 1
    %p231 = por %p229, %p230
    %p232 = scmp.ne.s32.totalorder %s223, %s224
    %p233 = scmp.eq.s32.totalorder %s24, 0
    %p234 = por %p232, %p233
    %p235 = scmp.ne.s32.totalorder %s223, %s224
    %p236 = scmp.eq.s32.totalorder %s25, 1
    %p237 = por %p235, %p236
    %p239 = scmp.ne.s32.totalorder %s224, %s238
    %p240 = scmp.eq.s32.totalorder %s25, 0
    %p241 = por %p239, %p240
    %s243 = sadd.s32 %s242, 1
    %p246 = scmp.eq.s32.totalorder %s19, 1
    %p247 = scmp.ne.s32.totalorder %s242, %s244
    %p248 = scmp.eq.s32.totalorder %s19, 0
    %p249 = por %p247, %p248
    %p250 = scmp.ne.s32.totalorder %s242, %s244
    %p251 = scmp.eq.s32.totalorder %s24, 1
    %p252 = por %p250, %p251
    %p253 = scmp.ne.s32.totalorder %s244, %s245
    %p254 = scmp.eq.s32.totalorder %s24, 0
    %p255 = por %p253, %p254
    %p256 = scmp.ne.s32.totalorder %s244, %s245
    %p257 = scmp.eq.s32.totalorder %s25, 1
    %p258 = por %p256, %p257
    %p260 = scmp.ne.s32.totalorder %s245, %s259
    %p261 = scmp.eq.s32.totalorder %s25, 0
    %p262 = por %p260, %p261
    %s263 = ssub.s32 %s19, %s26
    %p264 = scmp.eq.s32.totalorder %s263, 0
    %s266 = sadd.s32 %s265, 1
    %s267 = scalar_select %p264, %s265, %s266
    %p270 = pneg %p264
    %p271 = scmp.eq.s32.totalorder %s19, 1
    %p272 = por %p270, %p271
    %p273 = scmp.ne.s32.totalorder %s265, %s268
    %p274 = scmp.eq.s32.totalorder %s19, 0
    %p275 = por %p273, %p274
    %p276 = scmp.ne.s32.totalorder %s265, %s268
    %p277 = scmp.eq.s32.totalorder %s24, 1
    %p278 = por %p276, %p277
    %p279 = scmp.ne.s32.totalorder %s268, %s269
    %p280 = scmp.eq.s32.totalorder %s24, 0
    %p281 = por %p279, %p280
    %p282 = scmp.ne.s32.totalorder %s268, %s269
    %p283 = scmp.eq.s32.totalorder %s25, 1
    %p284 = por %p282, %p283
    %p286 = scmp.ne.s32.totalorder %s269, %s285
    %p287 = scmp.eq.s32.totalorder %s25, 0
    %p288 = por %p286, %p287
    %s289 = ssub.s32 %s19, %s26
    %p290 = scmp.eq.s32.totalorder %s289, 0
    %s292 = sadd.s32 %s291, 1
    %s293 = scalar_select %p290, %s291, %s292
    %p296 = pneg %p290
    %p297 = scmp.eq.s32.totalorder %s19, 1
    %p298 = por %p296, %p297
    %p299 = scmp.ne.s32.totalorder %s291, %s294
    %p300 = scmp.eq.s32.totalorder %s19, 0
    %p301 = por %p299, %p300
    %p302 = scmp.ne.s32.totalorder %s291, %s294
    %p303 = scmp.eq.s32.totalorder %s24, 1
    %p304 = por %p302, %p303
    %p305 = scmp.ne.s32.totalorder %s294, %s295
    %p306 = scmp.eq.s32.totalorder %s24, 0
    %p307 = por %p305, %p306
    %p308 = scmp.ne.s32.totalorder %s294, %s295
    %p309 = scmp.eq.s32.totalorder %s25, 1
    %p310 = por %p308, %p309
    %p312 = scmp.ne.s32.totalorder %s295, %s311
    %p313 = scmp.eq.s32.totalorder %s25, 0
    %p314 = por %p312, %p313
    %p315 = scmp.le.s32.totalorder 1, %s19
    %p316 = scmp.lt.s32.totalorder %s19, 3
    %p317 = pnand %p315, %p316
    %p318 = pneg %p317
    // Predicated region
    $region9: #{_head_forward.1} parent=5 // pred_check
      _
    $region10: #{_head_forward.1} parent=5 // pred_check_branch
      %320 = sbr.rel (%p317) target = $region12
    $region11: #{_head_forward.1} parent=5 // pred_region
      %s321 = ssub.s32 %s19, 1
      // Predicated region
      $region13: #{_head_forward.1} parent=11 // pred_check
        %p322 = pneg %p66
      $region14: #{_head_forward.1} parent=11 // pred_check_branch
        %324 = sbr.rel (%p322) target = $region16
      $region15: #{_head_forward.1} parent=11 // pred_region
        _
      $region16: #{_head_forward.1} parent=11 // pred_fallthru
        _
      // Predicated region
      $region17: #{_head_forward.1} parent=11 // pred_check
        %p325 = pneg %p87
      $region18: #{_head_forward.1} parent=11 // pred_check_branch
        %327 = sbr.rel (%p325) target = $region20
      $region19: #{_head_forward.1} parent=11 // pred_region
        _
      $region20: #{_head_forward.1} parent=11 // pred_fallthru
        _
      // Predicated region
      $region21: #{_head_forward.1} parent=11 // pred_check
        %p328 = pneg %p108
      $region22: #{_head_forward.1} parent=11 // pred_check_branch
        %330 = sbr.rel (%p328) target = $region24
      $region23: #{_head_forward.1} parent=11 // pred_region
        _
      $region24: #{_head_forward.1} parent=11 // pred_fallthru
        _
      // Predicated region
      $region25: #{_head_forward.1} parent=11 // pred_check
        %p331 = pneg %p129
      $region26: #{_head_forward.1} parent=11 // pred_check_branch
        %333 = sbr.rel (%p331) target = $region28
      $region27: #{_head_forward.1} parent=11 // pred_region
        _
      $region28: #{_head_forward.1} parent=11 // pred_fallthru
        _
      // Predicated region
      $region29: #{_head_forward.1} parent=11 // pred_check
        %p334 = pneg %p150
      $region30: #{_head_forward.1} parent=11 // pred_check_branch
        %336 = sbr.rel (%p334) target = $region32
      $region31: #{_head_forward.1} parent=11 // pred_region
        _
      $region32: #{_head_forward.1} parent=11 // pred_fallthru
        _
      // Predicated region
      $region33: #{_head_forward.1} parent=11 // pred_check
        %p337 = pneg %p171
      $region34: #{_head_forward.1} parent=11 // pred_check_branch
        %339 = sbr.rel (%p337) target = $region36
      $region35: #{_head_forward.1} parent=11 // pred_region
        _
      $region36: #{_head_forward.1} parent=11 // pred_fallthru
        _
      // Predicated region
      $region37: #{_head_forward.1} parent=11 // pred_check
        %p340 = pneg %p192
      $region38: #{_head_forward.1} parent=11 // pred_check_branch
        %342 = sbr.rel (%p340) target = $region40
      $region39: #{_head_forward.1} parent=11 // pred_region
        _
      $region40: #{_head_forward.1} parent=11 // pred_fallthru
        _
      // Predicated region
      $region41: #{_head_forward.1} parent=11 // pred_check
        %p343 = pneg %p213
      $region42: #{_head_forward.1} parent=11 // pred_check_branch
        %345 = sbr.rel (%p343) target = $region44
      $region43: #{_head_forward.1} parent=11 // pred_region
        _
      $region44: #{_head_forward.1} parent=11 // pred_fallthru
        _
      // Predicated region
      $region45: #{_head_forward.1} parent=11 // pred_check
        %p346 = pneg %p234
      $region46: #{_head_forward.1} parent=11 // pred_check_branch
        %348 = sbr.rel (%p346) target = $region48
      $region47: #{_head_forward.1} parent=11 // pred_region
        _
      $region48: #{_head_forward.1} parent=11 // pred_fallthru
        _
      // Predicated region
      $region49: #{_head_forward.1} parent=11 // pred_check
        %p349 = pneg %p255
      $region50: #{_head_forward.1} parent=11 // pred_check_branch
        %351 = sbr.rel (%p349) target = $region52
      $region51: #{_head_forward.1} parent=11 // pred_region
        _
      $region52: #{_head_forward.1} parent=11 // pred_fallthru
        _
    $region12: #{_head_forward.1} parent=5 // pred_fallthru
      _
    %p352 = scmp.lt.s32.totalorder %s19, 2
    // Predicated region
    $region53: #{_head_forward.1} parent=5 // pred_check
      %p353 = pneg %p352
    $region54: #{_head_forward.1} parent=5 // pred_check_branch
      %355 = sbr.rel (%p353) target = $region56
    $region55: #{_head_forward.1} parent=5 // pred_region
      // Predicated region
      $region57: #{_head_forward.1} parent=55 // pred_check
        %p356 = pneg %p39
      $region58: #{_head_forward.1} parent=55 // pred_check_branch
        %358 = sbr.rel (%p356) target = $region60
      $region59: #{_head_forward.1} parent=55 // pred_region
        %p359 = scmp.lt.s32.totalorder %s19, 1
        %s360 = scalar_select %p359, %s19, 1
        %s361 = smul.addr %s360, 2
        %s362 = smul.addr %s361, 8
        %s363 = scalar_lea.vmem %s0, %s362
      $region60: #{_head_forward.1} parent=55 // pred_fallthru
        _
    $region56: #{_head_forward.1} parent=5 // pred_fallthru
      _
    %p364 = scmp.le.s32.totalorder 1, %s19
    %p365 = scmp.lt.s32.totalorder %s19, 3
    %p366 = pnand %p364, %p365
    %p367 = pneg %p366
    // Predicated region
    $region61: #{_head_forward.1} parent=5 // pred_check
      _
    $region62: #{_head_forward.1} parent=5 // pred_check_branch
      %369 = sbr.rel (%p366) target = $region64
    $region63: #{_head_forward.1} parent=5 // pred_region
      %s370 = ssub.s32 %s19, 1
      %p371 = scmp.lt.s32.totalorder %s24, 1
      %s372 = scalar_select %p371, %s24, 1
      %s373 = smul.addr %s372, 2
      %s374 = smul.addr %s373, 8
      %s375 = scalar_lea.vmem %s0, %s374
      %p376 = pneg %p45
      %p377 = pneg %p42
      %p378 = pneg %p66
      %p379 = pneg %p63
      %p380 = pneg %p87
      %p381 = pneg %p84
      %p382 = pneg %p108
      %p383 = pneg %p105
      %p384 = pneg %p129
      %p385 = pneg %p126
      %p386 = pneg %p150
      %p387 = pneg %p147
      %p388 = pneg %p171
      %p389 = pneg %p168
      %p390 = pneg %p192
      %p391 = pneg %p189
      %p392 = pneg %p213
      %p393 = pneg %p210
      %p394 = pneg %p234
      %p395 = pneg %p231
      %p396 = pneg %p255
      %p397 = pneg %p252
      %p398 = pneg %p281
      %p399 = pneg %p278
      %p400 = scmp.lt.s32.totalorder %s24, 1
      %s401 = scalar_select %p400, %s24, 1
      %s402 = smul.addr %s401, 2
      %s403 = smul.addr %s402, 4
      %s404 = scalar_lea.vmem %s11, %s403
      %p405 = pneg %p307
      %p406 = pneg %p304
      %p407 = scmp.lt.s32.totalorder %s24, 1
      %s408 = scalar_select %p407, %s24, 1
      %s409 = smul.addr %s408, 2
      %s410 = smul.addr %s409, 8
      %s411 = scalar_lea.vmem %s12, %s410
      %p412 = scmp.lt.s32.totalorder %s24, 1
      %s413 = scalar_select %p412, %s24, 1
      %s414 = smul.addr %s413, 2
      %s415 = smul.addr %s414, 8
      %s416 = scalar_lea.vmem %s0, %s415
      %p417 = scmp.lt.s32.totalorder %s24, 1
      %s418 = scalar_select %p417, %s24, 1
      %s419 = smul.addr %s418, 2
      %s420 = smul.addr %s419, 4
      %s421 = scalar_lea.vmem %s11, %s420
      %p422 = scmp.lt.s32.totalorder %s24, 1
      %s423 = scalar_select %p422, %s24, 1
      %s424 = smul.addr %s423, 2
      %s425 = smul.addr %s424, 8
      %s426 = scalar_lea.vmem %s12, %s425
      %v427 = vld [vmem:[%s1] sm:$0xff]
      %v428 = vld [vmem:[%s1 + $0x8] sm:$0xff]
      %v429 = vld [vmem:[%s2] sm:$0xff]
      %v430 = vld [vmem:[%s2 + $0x8] sm:$0xff]
      %v431 = vld [vmem:[%s3] sm:$0xff]
      %v432 = vld [vmem:[%s4] sm:$0xff]
      %v433 = vld [vmem:[%s5] sm:$0xff]
      %v434 = vld [vmem:[%s6] sm:$0xff]
      %v435 = vld [vmem:[%s7] sm:$0xf]
      %v436 = vld [vmem:[%s8] sm:$0xf]
      %v437 = vld [vmem:[%s9] sm:$0xff]
      %v438 = vld [vmem:[%s10] sm:$0xff]
      %v439 = vlaneseq
      %v440 = vand.u32 %v439, 127
      %v441 = vadd.s32 %v440, 128
      %vm442 = vcmp.lt.s32.totalorder %v440, 0
      %v443 = vsub.s32 0, %v440
      %v444 = vsel %vm442, %v443, %v440
      %v445 = vshrl.u32 %v444, 4
      %v446 = vand.u32 %v444, 15
      %v447 = vsub.s32 0, %v446
      %v448 = vsel %vm442, %v447, %v446
      %vm449 = vcmp.lt.s32.totalorder %v441, 0
      %v450 = vsub.s32 0, %v441
      %v451 = vsel %vm449, %v450, %v441
      %v452 = vshrl.u32 %v451, 4
      %v453 = vand.u32 %v451, 15
      %v454 = vsub.s32 0, %v453
      %v455 = vsel %vm449, %v454, %v453
      %vm456 = vcmp.ne.s32.totalorder %v448, 0
      %vm457 = vcmp.ne.s32.totalorder %v455, 0
      %vm458 = vcmp.lt.s32.totalorder %v448, 0
      %vm459 = vcmp.lt.s32.totalorder %v455, 0
      %vm460 = vmand %vm458, %vm456
      %vm461 = vmand %vm459, %vm457
      %v462 = vadd.s32 %v448, 16
      %v463 = vadd.s32 %v455, 16
      %v464 = vsel %vm460, %v462, %v448
      %v465 = vsel %vm461, %v463, %v455
      %vm466 = vcmp.ge.s32.totalorder %v464, 1
      %vm467 = vcmp.ge.s32.totalorder %v465, 1
      %vm468 = vcmp.le.s32.totalorder %v464, 14
      %vm469 = vcmp.le.s32.totalorder %v465, 14
      %v470 = vld [vmem:[%s416] sm:$0xff]
      %v471 = vld [vmem:[%s416 + $0x8] sm:$0xff]
      %474 = vrot.lane.b32.xlu0 %v470, 17
      %v475 = vpop.permute.xlu0 %474
      %476 = vrot.lane.b32.xlu0 %v471, 17
      %v477 = vpop.permute.xlu0 %476
      %vm478 = vcmask 138240
      %v479 = vsel %vm478, %v475, %v477
      %v483 = vsel %vm478, 0.0, %v475
      %v484 = vsel %vm478, %v477, 0.0
      %v485 = vsel %vm466, 1, 0
      %v486 = vsel %vm467, 1, 0
      %vm487 = vcmp.eq.s32.totalorder %v485, 1
      %vm488 = vcmp.eq.s32.totalorder %v486, 1
      %v489 = vsel %vm487, %v483, 0.0
      %v490 = vsel %vm488, %v479, 0.0
      %v491 = vsel %vm468, 1, 0
      %v492 = vsel %vm469, 1, 0
      %vm493 = vcmp.eq.s32.totalorder %v491, 1
      %vm494 = vcmp.eq.s32.totalorder %v492, 1
      %497 = vrot.lane.b32.xlu0 %v483, 126
      %v498 = vpop.permute.xlu0 %497
      %499 = vrot.lane.b32.xlu0 %v479, 126
      %v500 = vpop.permute.xlu0 %499
      %501 = vrot.lane.b32.xlu0 %v484, 126
      %v502 = vpop.permute.xlu0 %501
      %vm503 = vcmask 1031168
      %v504 = vsel %vm503, %v498, %v500
      %v505 = vsel %vm503, %v500, %v502
      %v508 = vsel %vm493, %v504, 0.0
      %v509 = vsel %vm494, %v505, 0.0
      %510 = vrot.lane.b32.xlu0 %v483, 112
      %v511 = vpop.permute.xlu0 %510
      %512 = vrot.lane.b32.xlu0 %v479, 112
      %v513 = vpop.permute.xlu0 %512
      %514 = vrot.lane.b32.xlu0 %v484, 112
      %v515 = vpop.permute.xlu0 %514
      %vm516 = vcmask 916480
      %v517 = vsel %vm516, %v511, %v513
      %v518 = vsel %vm516, %v513, %v515
      %v521 = vsel %vm487, %v517, 0.0
      %v522 = vsel %vm488, %v518, 0.0
      %523 = vrot.lane.b32.xlu0 %v483, 110
      %v524 = vpop.permute.xlu0 %523
      %525 = vrot.lane.b32.xlu0 %v479, 110
      %v526 = vpop.permute.xlu0 %525
      %527 = vrot.lane.b32.xlu0 %v484, 110
      %v528 = vpop.permute.xlu0 %527
      %vm529 = vcmask 900096
      %v530 = vsel %vm529, %v524, %v526
      %v531 = vsel %vm529, %v526, %v528
      %v534 = vsel %vm493, %v530, 0.0
      %v535 = vsel %vm494, %v531, 0.0
      %536 = vrot.lane.b32.xlu0 %v483, 96
      %v537 = vpop.permute.xlu0 %536
      %538 = vrot.lane.b32.xlu0 %v479, 96
      %v539 = vpop.permute.xlu0 %538
      %540 = vrot.lane.b32.xlu0 %v484, 96
      %v541 = vpop.permute.xlu0 %540
      %vm542 = vcmask 785408
      %v543 = vsel %vm542, %v537, %v539
      %v544 = vsel %vm542, %v539, %v541
      %v547 = vsel %vm487, %v543, 0.0
      %v548 = vsel %vm488, %v544, 0.0
      %549 = vrot.lane.b32.xlu0 %v483, 94
      %v550 = vpop.permute.xlu0 %549
      %551 = vrot.lane.b32.xlu0 %v479, 94
      %v552 = vpop.permute.xlu0 %551
      %553 = vrot.lane.b32.xlu0 %v484, 94
      %v554 = vpop.permute.xlu0 %553
      %vm555 = vcmask 769024
      %v556 = vsel %vm555, %v550, %v552
      %v557 = vsel %vm555, %v552, %v554
      %v560 = vsel %vm493, %v556, 0.0
      %v561 = vsel %vm494, %v557, 0.0
      %562 = vrot.lane.b32.xlu0 %v483, 127
      %v563 = vpop.permute.xlu0 %562
      %564 = vrot.lane.b32.xlu0 %v479, 127
      %v565 = vpop.permute.xlu0 %564
      %566 = vrot.lane.b32.xlu0 %v484, 127
      %v567 = vpop.permute.xlu0 %566
      %vm568 = vcmask 1039360
      %v569 = vsel %vm568, %v563, %v565
      %v570 = vsel %vm568, %v565, %v567
      %573 = vrot.lane.b32.xlu0 %v483, 111
      %v574 = vpop.permute.xlu0 %573
      %575 = vrot.lane.b32.xlu0 %v479, 111
      %v576 = vpop.permute.xlu0 %575
      %577 = vrot.lane.b32.xlu0 %v484, 111
      %v578 = vpop.permute.xlu0 %577
      %vm579 = vcmask 908288
      %v580 = vsel %vm579, %v574, %v576
      %v581 = vsel %vm579, %v576, %v578
      %584 = vrot.lane.b32.xlu0 %v483, 95
      %v585 = vpop.permute.xlu0 %584
      %586 = vrot.lane.b32.xlu0 %v479, 95
      %v587 = vpop.permute.xlu0 %586
      %588 = vrot.lane.b32.xlu0 %v484, 95
      %v589 = vpop.permute.xlu0 %588
      %vm590 = vcmask 777216
      %v591 = vsel %vm590, %v585, %v587
      %v592 = vsel %vm590, %v587, %v589
      %596 = vset.pattern.permute.xlu0 0
      %597 = vperm.xlu0 %596, %v429
      %v598 = vpop.permute.xlu0 %597
      %601 = vset.pattern.permute.xlu0 0
      %602 = vperm.xlu0 %601, %v430
      %v603 = vpop.permute.xlu0 %602
      %vm605 = vcmask 588800
      %v607 = vsel %vm605, %v427, 0
      %v610 = vsel %vm605, %v428, 0
      %612 = vmatprep.subr.mxu0 %v490
      %613 = vmatpush1.msra.mxu0 %v489
      %614 = vmatprep.subr.mxu0 %v570
      %615 = vmatpush1.msra.mxu0 %v569
      %616 = vmatprep.subr.mxu0 %v509
      %617 = vmatpush1.msra.mxu0 %v508
      %618 = vmatprep.subr.mxu0 %v522
      %619 = vmatpush1.msra.mxu0 %v521
      %620 = vmatprep.subr.mxu0 %v581
      %621 = vmatpush1.msra.mxu0 %v580
      %622 = vmatprep.subr.mxu0 %v535
      %623 = vmatpush1.msra.mxu0 %v534
      %624 = vmatprep.subr.mxu0 %v548
      %625 = vmatpush1.msra.mxu0 %v547
      %626 = vmatprep.subr.mxu0 %v592
      %627 = vmatpush1.msra.mxu0 %v591
      %628 = vmatprep.subr.mxu0 %v561
      %629 = vmatpush1.msra.mxu0 %v560
      %630 = vmatprep.subr.mxu0 0.0
      %631 = vmatpush1.msra.mxu0 0.0
      %632 = vmatprep.subr.mxu0 0.0
      %633 = vmatpush1.msra.mxu0 0.0
      %634 = vmatprep.subr.mxu0 0.0
      %635 = vmatpush1.msra.mxu0 0.0
      %636 = vmatprep.subr.mxu0 0.0
      %637 = vmatpush1.msra.mxu0 0.0
      %638 = vmatprep.subr.mxu0 0.0
      %639 = vmatpush1.msra.mxu0 0.0
      %640 = vmatprep.subr.mxu0 0.0
      %641 = vmatpush1.msra.mxu0 0.0
      %642 = vmatprep.subr.mxu0 0.0
      %643 = vmatpush1.msra.mxu0 0.0
      %644 = vmatprep.subr.mxu0 0.0
      %645 = vmatpush1.msra.mxu0 0.0
      %646 = vmatprep.subr.mxu0 0.0
      %647 = vmatpush1.msra.mxu0 0.0
      %648 = vmatprep.subr.mxu0 0.0
      %649 = vmatpush1.msra.mxu0 0.0
      %650 = vmatprep.subr.mxu0 0.0
      %651 = vmatpush1.msra.mxu0 0.0
      %652 = vmatprep.subr.mxu0 0.0
      %653 = vmatpush1.msra.mxu0 0.0
      %654 = vmatprep.subr.mxu0 0.0
      %655 = vmatpush1.msra.mxu0 0.0
      %656 = vmatprep.subr.mxu0 0.0
      %657 = vmatpush1.msra.mxu0 0.0
      %658 = vmatprep.subr.mxu0 0.0
      %659 = vmatpush1.msra.mxu0 0.0
      %660 = vmatprep.subr.mxu0 0.0
      %661 = vmatpush1.msra.mxu0 0.0
      %662 = vmatprep.subr.mxu0 0.0
      %663 = vmatpush1.msra.mxu0 0.0
      %664 = vmatprep.subr.mxu0 0.0
      %665 = vmatpush1.msra.mxu0 0.0
      %666 = vmatprep.subr.mxu0 0.0
      %667 = vmatpush1.msra.mxu0 0.0
      %668 = vmatprep.subr.mxu0 0.0
      %669 = vmatpush1.msra.mxu0 0.0
      %670 = vmatprep.subr.mxu0 0.0
      %671 = vmatpush1.msra.mxu0 0.0
      %672 = vmatprep.subr.mxu0 0.0
      %673 = vmatpush1.msra.mxu0 0.0
      %674 = vmatprep.subr.mxu0 0.0
      %675 = vmatpush1.msra.mxu0 0.0
      %676 = vmatprep.mubr.f32.mxu0 0.0
      %677 = vmatmul.mubr.f32.gmra.mrb[0].mxu0 %v607
      %v678 = vpop.f32.mrb[0].mxu0
      %v679 = vadd.f32 %v598, %v678
      %v680 = vpop.f32.mrb[0].mxu0
      %v681 = vadd.f32 %v598, %v680
      %682 = vmatprep.mubr.f32.mxu0 0.0
      %683 = vmatmul.mubr.f32.gmra.mrb[0].mxu0 %v610
      %v684 = vpop.f32.mrb[0].mxu0
      %v685 = vadd.f32 %v603, %v684
      %v686 = vpop.f32.mrb[0].mxu0
      %v687 = vadd.f32 %v603, %v686
      %688 = vdwg.mxu0
      %v689 = vmax.f32 %v679, 0.0
      %v690 = vmax.f32 %v681, 0.0
      %v691 = vmax.f32 %v685, 0.0
      %v692 = vmax.f32 %v687, 0.0
      %695 = vrot.lane.b32.xlu0 %v689, 17
      %v696 = vpop.permute.xlu0 %695
      %697 = vrot.lane.b32.xlu0 %v690, 17
      %v698 = vpop.permute.xlu0 %697
      %v699 = vsel %vm478, %v696, %v698
      %v703 = vsel %vm478, 0.0, %v696
      %v704 = vsel %vm478, %v698, 0.0
      %v705 = vsel %vm487, %v703, 0.0
      %v706 = vsel %vm488, %v699, 0.0
      %709 = vrot.lane.b32.xlu0 %v703, 126
      %v710 = vpop.permute.xlu0 %709
      %711 = vrot.lane.b32.xlu0 %v699, 126
      %v712 = vpop.permute.xlu0 %711
      %713 = vrot.lane.b32.xlu0 %v704, 126
      %v714 = vpop.permute.xlu0 %713
      %v715 = vsel %vm503, %v710, %v712
      %v716 = vsel %vm503, %v712, %v714
      %v719 = vsel %vm493, %v715, 0.0
      %v720 = vsel %vm494, %v716, 0.0
      %721 = vrot.lane.b32.xlu0 %v703, 112
      %v722 = vpop.permute.xlu0 %721
      %723 = vrot.lane.b32.xlu0 %v699, 112
      %v724 = vpop.permute.xlu0 %723
      %725 = vrot.lane.b32.xlu0 %v704, 112
      %v726 = vpop.permute.xlu0 %725
      %v727 = vsel %vm516, %v722, %v724
      %v728 = vsel %vm516, %v724, %v726
      %v731 = vsel %vm487, %v727, 0.0
      %v732 = vsel %vm488, %v728, 0.0
      %733 = vrot.lane.b32.xlu0 %v703, 110
      %v734 = vpop.permute.xlu0 %733
      %735 = vrot.lane.b32.xlu0 %v699, 110
      %v736 = vpop.permute.xlu0 %735
      %737 = vrot.lane.b32.xlu0 %v704, 110
      %v738 = vpop.permute.xlu0 %737
      %v739 = vsel %vm529, %v734, %v736
      %v740 = vsel %vm529, %v736, %v738
      %v743 = vsel %vm493, %v739, 0.0
      %v744 = vsel %vm494, %v740, 0.0
      %745 = vrot.lane.b32.xlu0 %v703, 96
      %v746 = vpop.permute.xlu0 %745
      %747 = vrot.lane.b32.xlu0 %v699, 96
      %v748 = vpop.permute.xlu0 %747
      %749 = vrot.lane.b32.xlu0 %v704, 96
      %v750 = vpop.permute.xlu0 %749
      %v751 = vsel %vm542, %v746, %v748
      %v752 = vsel %vm542, %v748, %v750
      %v755 = vsel %vm487, %v751, 0.0
      %v756 = vsel %vm488, %v752, 0.0
      %757 = vrot.lane.b32.xlu0 %v703, 94
      %v758 = vpop.permute.xlu0 %757
      %759 = vrot.lane.b32.xlu0 %v699, 94
      %v760 = vpop.permute.xlu0 %759
      %761 = vrot.lane.b32.xlu0 %v704, 94
      %v762 = vpop.permute.xlu0 %761
      %v763 = vsel %vm555, %v758, %v760
      %v764 = vsel %vm555, %v760, %v762
      %v767 = vsel %vm493, %v763, 0.0
      %v768 = vsel %vm494, %v764, 0.0
      %769 = vrot.lane.b32.xlu0 %v703, 127
      %v770 = vpop.permute.xlu0 %769
      %771 = vrot.lane.b32.xlu0 %v699, 127
      %v772 = vpop.permute.xlu0 %771
      %773 = vrot.lane.b32.xlu0 %v704, 127
      %v774 = vpop.permute.xlu0 %773
      %v775 = vsel %vm568, %v770, %v772
      %v776 = vsel %vm568, %v772, %v774
      %779 = vrot.lane.b32.xlu0 %v703, 111
      %v780 = vpop.permute.xlu0 %779
      %781 = vrot.lane.b32.xlu0 %v699, 111
      %v782 = vpop.permute.xlu0 %781
      %783 = vrot.lane.b32.xlu0 %v704, 111
      %v784 = vpop.permute.xlu0 %783
      %v785 = vsel %vm579, %v780, %v782
      %v786 = vsel %vm579, %v782, %v784
      %789 = vrot.lane.b32.xlu0 %v703, 95
      %v790 = vpop.permute.xlu0 %789
      %791 = vrot.lane.b32.xlu0 %v699, 95
      %v792 = vpop.permute.xlu0 %791
      %793 = vrot.lane.b32.xlu0 %v704, 95
      %v794 = vpop.permute.xlu0 %793
      %v795 = vsel %vm590, %v790, %v792
      %v796 = vsel %vm590, %v792, %v794
      %800 = vset.pattern.permute.xlu0 0
      %801 = vperm.xlu0 %800, %v432
      %v802 = vpop.permute.xlu0 %801
      %v805 = vsel %vm605, %v431, 0
      %807 = vmatprep.subr.mxu0 %v706
      %808 = vmatpush1.msra.mxu0 %v705
      %809 = vmatprep.subr.mxu0 %v776
      %810 = vmatpush1.msra.mxu0 %v775
      %811 = vmatprep.subr.mxu0 %v720
      %812 = vmatpush1.msra.mxu0 %v719
      %813 = vmatprep.subr.mxu0 %v732
      %814 = vmatpush1.msra.mxu0 %v731
      %815 = vmatprep.subr.mxu0 %v786
      %816 = vmatpush1.msra.mxu0 %v785
      %817 = vmatprep.subr.mxu0 %v744
      %818 = vmatpush1.msra.mxu0 %v743
      %819 = vmatprep.subr.mxu0 %v756
      %820 = vmatpush1.msra.mxu0 %v755
      %821 = vmatprep.subr.mxu0 %v796
      %822 = vmatpush1.msra.mxu0 %v795
      %823 = vmatprep.subr.mxu0 %v768
      %824 = vmatpush1.msra.mxu0 %v767
      %825 = vmatprep.subr.mxu0 0.0
      %826 = vmatpush1.msra.mxu0 0.0
      %827 = vmatprep.subr.mxu0 0.0
      %828 = vmatpush1.msra.mxu0 0.0
      %829 = vmatprep.subr.mxu0 0.0
      %830 = vmatpush1.msra.mxu0 0.0
      %831 = vmatprep.subr.mxu0 0.0
      %832 = vmatpush1.msra.mxu0 0.0
      %833 = vmatprep.subr.mxu0 0.0
      %834 = vmatpush1.msra.mxu0 0.0
      %835 = vmatprep.subr.mxu0 0.0
      %836 = vmatpush1.msra.mxu0 0.0
      %837 = vmatprep.subr.mxu0 0.0
      %838 = vmatpush1.msra.mxu0 0.0
      %839 = vmatprep.subr.mxu0 0.0
      %840 = vmatpush1.msra.mxu0 0.0
      %841 = vmatprep.subr.mxu0 0.0
      %842 = vmatpush1.msra.mxu0 0.0
      %843 = vmatprep.subr.mxu0 0.0
      %844 = vmatpush1.msra.mxu0 0.0
      %845 = vmatprep.subr.mxu0 0.0
      %846 = vmatpush1.msra.mxu0 0.0
      %847 = vmatprep.subr.mxu0 0.0
      %848 = vmatpush1.msra.mxu0 0.0
      %849 = vmatprep.subr.mxu0 0.0
      %850 = vmatpush1.msra.mxu0 0.0
      %851 = vmatprep.subr.mxu0 0.0
      %852 = vmatpush1.msra.mxu0 0.0
      %853 = vmatprep.subr.mxu0 0.0
      %854 = vmatpush1.msra.mxu0 0.0
      %855 = vmatprep.subr.mxu0 0.0
      %856 = vmatpush1.msra.mxu0 0.0
      %857 = vmatprep.subr.mxu0 0.0
      %858 = vmatpush1.msra.mxu0 0.0
      %859 = vmatprep.subr.mxu0 0.0
      %860 = vmatpush1.msra.mxu0 0.0
      %861 = vmatprep.subr.mxu0 0.0
      %862 = vmatpush1.msra.mxu0 0.0
      %863 = vmatprep.subr.mxu0 0.0
      %864 = vmatpush1.msra.mxu0 0.0
      %865 = vmatprep.subr.mxu0 0.0
      %866 = vmatpush1.msra.mxu0 0.0
      %867 = vmatprep.subr.mxu0 0.0
      %868 = vmatpush1.msra.mxu0 0.0
      %869 = vmatprep.subr.mxu0 0.0
      %870 = vmatpush1.msra.mxu0 0.0
      %871 = vmatprep.mubr.f32.mxu0 0.0
      %872 = vmatmul.mubr.f32.gmra.mrb[0].mxu0 %v805
      %v873 = vpop.f32.mrb[0].mxu0
      %v874 = vadd.f32 %v802, %v873
      %v875 = vpop.f32.mrb[0].mxu0
      %v876 = vadd.f32 %v802, %v875
      %877 = vdwg.mxu0
      %v878 = vmax.f32 %v874, 0.0
      %v879 = vmax.f32 %v876, 0.0
      %882 = vrot.lane.b32.xlu0 %v691, 17
      %v883 = vpop.permute.xlu0 %882
      %884 = vrot.lane.b32.xlu0 %v692, 17
      %v885 = vpop.permute.xlu0 %884
      %v886 = vsel %vm478, %v883, %v885
      %v890 = vsel %vm478, 0.0, %v883
      %v891 = vsel %vm478, %v885, 0.0
      %v892 = vsel %vm487, %v890, 0.0
      %v893 = vsel %vm488, %v886, 0.0
      %896 = vrot.lane.b32.xlu0 %v890, 126
      %v897 = vpop.permute.xlu0 %896
      %898 = vrot.lane.b32.xlu0 %v886, 126
      %v899 = vpop.permute.xlu0 %898
      %900 = vrot.lane.b32.xlu0 %v891, 126
      %v901 = vpop.permute.xlu0 %900
      %v902 = vsel %vm503, %v897, %v899
      %v903 = vsel %vm503, %v899, %v901
      %v906 = vsel %vm493, %v902, 0.0
      %v907 = vsel %vm494, %v903, 0.0
      %908 = vrot.lane.b32.xlu0 %v890, 112
      %v909 = vpop.permute.xlu0 %908
      %910 = vrot.lane.b32.xlu0 %v886, 112
      %v911 = vpop.permute.xlu0 %910
      %912 = vrot.lane.b32.xlu0 %v891, 112
      %v913 = vpop.permute.xlu0 %912
      %v914 = vsel %vm516, %v909, %v911
      %v915 = vsel %vm516, %v911, %v913
      %v918 = vsel %vm487, %v914, 0.0
      %v919 = vsel %vm488, %v915, 0.0
      %920 = vrot.lane.b32.xlu0 %v890, 110
      %v921 = vpop.permute.xlu0 %920
      %922 = vrot.lane.b32.xlu0 %v886, 110
      %v923 = vpop.permute.xlu0 %922
      %924 = vrot.lane.b32.xlu0 %v891, 110
      %v925 = vpop.permute.xlu0 %924
      %v926 = vsel %vm529, %v921, %v923
      %v927 = vsel %vm529, %v923, %v925
      %v930 = vsel %vm493, %v926, 0.0
      %v931 = vsel %vm494, %v927, 0.0
      %932 = vrot.lane.b32.xlu0 %v890, 96
      %v933 = vpop.permute.xlu0 %932
      %934 = vrot.lane.b32.xlu0 %v886, 96
      %v935 = vpop.permute.xlu0 %934
      %936 = vrot.lane.b32.xlu0 %v891, 96
      %v937 = vpop.permute.xlu0 %936
      %v938 = vsel %vm542, %v933, %v935
      %v939 = vsel %vm542, %v935, %v937
      %v942 = vsel %vm487, %v938, 0.0
      %v943 = vsel %vm488, %v939, 0.0
      %944 = vrot.lane.b32.xlu0 %v890, 94
      %v945 = vpop.permute.xlu0 %944
      %946 = vrot.lane.b32.xlu0 %v886, 94
      %v947 = vpop.permute.xlu0 %946
      %948 = vrot.lane.b32.xlu0 %v891, 94
      %v949 = vpop.permute.xlu0 %948
      %v950 = vsel %vm555, %v945, %v947
      %v951 = vsel %vm555, %v947, %v949
      %v954 = vsel %vm493, %v950, 0.0
      %v955 = vsel %vm494, %v951, 0.0
      %956 = vrot.lane.b32.xlu0 %v890, 127
      %v957 = vpop.permute.xlu0 %956
      %958 = vrot.lane.b32.xlu0 %v886, 127
      %v959 = vpop.permute.xlu0 %958
      %960 = vrot.lane.b32.xlu0 %v891, 127
      %v961 = vpop.permute.xlu0 %960
      %v962 = vsel %vm568, %v957, %v959
      %v963 = vsel %vm568, %v959, %v961
      %966 = vrot.lane.b32.xlu0 %v890, 111
      %v967 = vpop.permute.xlu0 %966
      %968 = vrot.lane.b32.xlu0 %v886, 111
      %v969 = vpop.permute.xlu0 %968
      %970 = vrot.lane.b32.xlu0 %v891, 111
      %v971 = vpop.permute.xlu0 %970
      %v972 = vsel %vm579, %v967, %v969
      %v973 = vsel %vm579, %v969, %v971
      %976 = vrot.lane.b32.xlu0 %v890, 95
      %v977 = vpop.permute.xlu0 %976
      %978 = vrot.lane.b32.xlu0 %v886, 95
      %v979 = vpop.permute.xlu0 %978
      %980 = vrot.lane.b32.xlu0 %v891, 95
      %v981 = vpop.permute.xlu0 %980
      %v982 = vsel %vm590, %v977, %v979
      %v983 = vsel %vm590, %v979, %v981
      %987 = vset.pattern.permute.xlu0 0
      %988 = vperm.xlu0 %987, %v434
      %v989 = vpop.permute.xlu0 %988
      %v992 = vsel %vm605, %v433, 0
      %994 = vmatprep.subr.mxu0 %v893
      %995 = vmatpush1.msra.mxu0 %v892
      %996 = vmatprep.subr.mxu0 %v963
      %997 = vmatpush1.msra.mxu0 %v962
      %998 = vmatprep.subr.mxu0 %v907
      %999 = vmatpush1.msra.mxu0 %v906
      %1000 = vmatprep.subr.mxu0 %v919
      %1001 = vmatpush1.msra.mxu0 %v918
      %1002 = vmatprep.subr.mxu0 %v973
      %1003 = vmatpush1.msra.mxu0 %v972
      %1004 = vmatprep.subr.mxu0 %v931
      %1005 = vmatpush1.msra.mxu0 %v930
      %1006 = vmatprep.subr.mxu0 %v943
      %1007 = vmatpush1.msra.mxu0 %v942
      %1008 = vmatprep.subr.mxu0 %v983
      %1009 = vmatpush1.msra.mxu0 %v982
      %1010 = vmatprep.subr.mxu0 %v955
      %1011 = vmatpush1.msra.mxu0 %v954
      %1012 = vmatprep.subr.mxu0 0.0
      %1013 = vmatpush1.msra.mxu0 0.0
      %1014 = vmatprep.subr.mxu0 0.0
      %1015 = vmatpush1.msra.mxu0 0.0
      %1016 = vmatprep.subr.mxu0 0.0
      %1017 = vmatpush1.msra.mxu0 0.0
      %1018 = vmatprep.subr.mxu0 0.0
      %1019 = vmatpush1.msra.mxu0 0.0
      %1020 = vmatprep.subr.mxu0 0.0
      %1021 = vmatpush1.msra.mxu0 0.0
      %1022 = vmatprep.subr.mxu0 0.0
      %1023 = vmatpush1.msra.mxu0 0.0
      %1024 = vmatprep.subr.mxu0 0.0
      %1025 = vmatpush1.msra.mxu0 0.0
      %1026 = vmatprep.subr.mxu0 0.0
      %1027 = vmatpush1.msra.mxu0 0.0
      %1028 = vmatprep.subr.mxu0 0.0
      %1029 = vmatpush1.msra.mxu0 0.0
      %1030 = vmatprep.subr.mxu0 0.0
      %1031 = vmatpush1.msra.mxu0 0.0
      %1032 = vmatprep.subr.mxu0 0.0
      %1033 = vmatpush1.msra.mxu0 0.0
      %1034 = vmatprep.subr.mxu0 0.0
      %1035 = vmatpush1.msra.mxu0 0.0
      %1036 = vmatprep.subr.mxu0 0.0
      %1037 = vmatpush1.msra.mxu0 0.0
      %1038 = vmatprep.subr.mxu0 0.0
      %1039 = vmatpush1.msra.mxu0 0.0
      %1040 = vmatprep.subr.mxu0 0.0
      %1041 = vmatpush1.msra.mxu0 0.0
      %1042 = vmatprep.subr.mxu0 0.0
      %1043 = vmatpush1.msra.mxu0 0.0
      %1044 = vmatprep.subr.mxu0 0.0
      %1045 = vmatpush1.msra.mxu0 0.0
      %1046 = vmatprep.subr.mxu0 0.0
      %1047 = vmatpush1.msra.mxu0 0.0
      %1048 = vmatprep.subr.mxu0 0.0
      %1049 = vmatpush1.msra.mxu0 0.0
      %1050 = vmatprep.subr.mxu0 0.0
      %1051 = vmatpush1.msra.mxu0 0.0
      %1052 = vmatprep.subr.mxu0 0.0
      %1053 = vmatpush1.msra.mxu0 0.0
      %1054 = vmatprep.subr.mxu0 0.0
      %1055 = vmatpush1.msra.mxu0 0.0
      %1056 = vmatprep.subr.mxu0 0.0
      %1057 = vmatpush1.msra.mxu0 0.0
      %1058 = vmatprep.mubr.f32.mxu0 0.0
      %1059 = vmatmul.mubr.f32.gmra.mrb[0].mxu0 %v992
      %v1060 = vpop.f32.mrb[0].mxu0
      %v1061 = vadd.f32 %v989, %v1060
      %v1062 = vpop.f32.mrb[0].mxu0
      %v1063 = vadd.f32 %v989, %v1062
      %1064 = vdwg.mxu0
      %v1065 = vmax.f32 %v1061, 0.0
      %v1066 = vmax.f32 %v1063, 0.0
      %1069 = vrot.lane.b32.xlu0 %v878, 17
      %v1070 = vpop.permute.xlu0 %1069
      %1071 = vrot.lane.b32.xlu0 %v879, 17
      %v1072 = vpop.permute.xlu0 %1071
      %v1073 = vsel %vm478, %v1070, %v1072
      %v1077 = vsel %vm478, 0.0, %v1070
      %v1078 = vsel %vm478, %v1072, 0.0
      %v1079 = vsel %vm487, %v1077, 0.0
      %v1080 = vsel %vm488, %v1073, 0.0
      %1083 = vrot.lane.b32.xlu0 %v1077, 126
      %v1084 = vpop.permute.xlu0 %1083
      %1085 = vrot.lane.b32.xlu0 %v1073, 126
      %v1086 = vpop.permute.xlu0 %1085
      %1087 = vrot.lane.b32.xlu0 %v1078, 126
      %v1088 = vpop.permute.xlu0 %1087
      %v1089 = vsel %vm503, %v1084, %v1086
      %v1090 = vsel %vm503, %v1086, %v1088
      %v1093 = vsel %vm493, %v1089, 0.0
      %v1094 = vsel %vm494, %v1090, 0.0
      %1095 = vrot.lane.b32.xlu0 %v1077, 112
      %v1096 = vpop.permute.xlu0 %1095
      %1097 = vrot.lane.b32.xlu0 %v1073, 112
      %v1098 = vpop.permute.xlu0 %1097
      %1099 = vrot.lane.b32.xlu0 %v1078, 112
      %v1100 = vpop.permute.xlu0 %1099
      %v1101 = vsel %vm516, %v1096, %v1098
      %v1102 = vsel %vm516, %v1098, %v1100
      %v1105 = vsel %vm487, %v1101, 0.0
      %v1106 = vsel %vm488, %v1102, 0.0
      %1107 = vrot.lane.b32.xlu0 %v1077, 110
      %v1108 = vpop.permute.xlu0 %1107
      %1109 = vrot.lane.b32.xlu0 %v1073, 110
      %v1110 = vpop.permute.xlu0 %1109
      %1111 = vrot.lane.b32.xlu0 %v1078, 110
      %v1112 = vpop.permute.xlu0 %1111
      %v1113 = vsel %vm529, %v1108, %v1110
      %v1114 = vsel %vm529, %v1110, %v1112
      %v1117 = vsel %vm493, %v1113, 0.0
      %v1118 = vsel %vm494, %v1114, 0.0
      %1119 = vrot.lane.b32.xlu0 %v1077, 96
      %v1120 = vpop.permute.xlu0 %1119
      %1121 = vrot.lane.b32.xlu0 %v1073, 96
      %v1122 = vpop.permute.xlu0 %1121
      %1123 = vrot.lane.b32.xlu0 %v1078, 96
      %v1124 = vpop.permute.xlu0 %1123
      %v1125 = vsel %vm542, %v1120, %v1122
      %v1126 = vsel %vm542, %v1122, %v1124
      %v1129 = vsel %vm487, %v1125, 0.0
      %v1130 = vsel %vm488, %v1126, 0.0
      %1131 = vrot.lane.b32.xlu0 %v1077, 94
      %v1132 = vpop.permute.xlu0 %1131
      %1133 = vrot.lane.b32.xlu0 %v1073, 94
      %v1134 = vpop.permute.xlu0 %1133
      %1135 = vrot.lane.b32.xlu0 %v1078, 94
      %v1136 = vpop.permute.xlu0 %1135
      %v1137 = vsel %vm555, %v1132, %v1134
      %v1138 = vsel %vm555, %v1134, %v1136
      %v1141 = vsel %vm493, %v1137, 0.0
      %v1142 = vsel %vm494, %v1138, 0.0
      %1143 = vrot.lane.b32.xlu0 %v1077, 127
      %v1144 = vpop.permute.xlu0 %1143
      %1145 = vrot.lane.b32.xlu0 %v1073, 127
      %v1146 = vpop.permute.xlu0 %1145
      %1147 = vrot.lane.b32.xlu0 %v1078, 127
      %v1148 = vpop.permute.xlu0 %1147
      %v1149 = vsel %vm568, %v1144, %v1146
      %v1150 = vsel %vm568, %v1146, %v1148
      %1153 = vrot.lane.b32.xlu0 %v1077, 111
      %v1154 = vpop.permute.xlu0 %1153
      %1155 = vrot.lane.b32.xlu0 %v1073, 111
      %v1156 = vpop.permute.xlu0 %1155
      %1157 = vrot.lane.b32.xlu0 %v1078, 111
      %v1158 = vpop.permute.xlu0 %1157
      %v1159 = vsel %vm579, %v1154, %v1156
      %v1160 = vsel %vm579, %v1156, %v1158
      %1163 = vrot.lane.b32.xlu0 %v1077, 95
      %v1164 = vpop.permute.xlu0 %1163
      %1165 = vrot.lane.b32.xlu0 %v1073, 95
      %v1166 = vpop.permute.xlu0 %1165
      %1167 = vrot.lane.b32.xlu0 %v1078, 95
      %v1168 = vpop.permute.xlu0 %1167
      %v1169 = vsel %vm590, %v1164, %v1166
      %v1170 = vsel %vm590, %v1166, %v1168
      %1174 = vset.pattern.permute.xlu0 0
      %1175 = vperm.xlu0 %1174, %v436
      %v1176 = vpop.permute.xlu0 %1175
      %v1179 = vsel %vm605, %v435, 0
      %1181 = vmatprep.subr.mxu0 %v1080
      %1182 = vmatpush1.msra.mxu0 %v1079
      %1183 = vmatprep.subr.mxu0 %v1150
      %1184 = vmatpush1.msra.mxu0 %v1149
      %1185 = vmatprep.subr.mxu0 %v1094
      %1186 = vmatpush1.msra.mxu0 %v1093
      %1187 = vmatprep.subr.mxu0 %v1106
      %1188 = vmatpush1.msra.mxu0 %v1105
      %1189 = vmatprep.subr.mxu0 %v1160
      %1190 = vmatpush1.msra.mxu0 %v1159
      %1191 = vmatprep.subr.mxu0 %v1118
      %1192 = vmatpush1.msra.mxu0 %v1117
      %1193 = vmatprep.subr.mxu0 %v1130
      %1194 = vmatpush1.msra.mxu0 %v1129
      %1195 = vmatprep.subr.mxu0 %v1170
      %1196 = vmatpush1.msra.mxu0 %v1169
      %1197 = vmatprep.subr.mxu0 %v1142
      %1198 = vmatpush1.msra.mxu0 %v1141
      %1199 = vmatprep.subr.mxu0 0.0
      %1200 = vmatpush1.msra.mxu0 0.0
      %1201 = vmatprep.subr.mxu0 0.0
      %1202 = vmatpush1.msra.mxu0 0.0
      %1203 = vmatprep.subr.mxu0 0.0
      %1204 = vmatpush1.msra.mxu0 0.0
      %1205 = vmatprep.subr.mxu0 0.0
      %1206 = vmatpush1.msra.mxu0 0.0
      %1207 = vmatprep.subr.mxu0 0.0
      %1208 = vmatpush1.msra.mxu0 0.0
      %1209 = vmatprep.subr.mxu0 0.0
      %1210 = vmatpush1.msra.mxu0 0.0
      %1211 = vmatprep.subr.mxu0 0.0
      %1212 = vmatpush1.msra.mxu0 0.0
      %1213 = vmatprep.subr.mxu0 0.0
      %1214 = vmatpush1.msra.mxu0 0.0
      %1215 = vmatprep.subr.mxu0 0.0
      %1216 = vmatpush1.msra.mxu0 0.0
      %1217 = vmatprep.subr.mxu0 0.0
      %1218 = vmatpush1.msra.mxu0 0.0
      %1219 = vmatprep.subr.mxu0 0.0
      %1220 = vmatpush1.msra.mxu0 0.0
      %1221 = vmatprep.subr.mxu0 0.0
      %1222 = vmatpush1.msra.mxu0 0.0
      %1223 = vmatprep.subr.mxu0 0.0
      %1224 = vmatpush1.msra.mxu0 0.0
      %1225 = vmatprep.subr.mxu0 0.0
      %1226 = vmatpush1.msra.mxu0 0.0
      %1227 = vmatprep.subr.mxu0 0.0
      %1228 = vmatpush1.msra.mxu0 0.0
      %1229 = vmatprep.subr.mxu0 0.0
      %1230 = vmatpush1.msra.mxu0 0.0
      %1231 = vmatprep.subr.mxu0 0.0
      %1232 = vmatpush1.msra.mxu0 0.0
      %1233 = vmatprep.subr.mxu0 0.0
      %1234 = vmatpush1.msra.mxu0 0.0
      %1235 = vmatprep.subr.mxu0 0.0
      %1236 = vmatpush1.msra.mxu0 0.0
      %1237 = vmatprep.subr.mxu0 0.0
      %1238 = vmatpush1.msra.mxu0 0.0
      %1239 = vmatprep.subr.mxu0 0.0
      %1240 = vmatpush1.msra.mxu0 0.0
      %1241 = vmatprep.subr.mxu0 0.0
      %1242 = vmatpush1.msra.mxu0 0.0
      %1243 = vmatprep.subr.mxu0 0.0
      %1244 = vmatpush1.msra.mxu0 0.0
      %1245 = vmatprep.mubr.f32.mxu0 0.0
      %1246 = vmatmul.mubr.f32.gmra.mrb[0].mxu0 %v1179
      %v1247 = vpop.f32.mrb[0].mxu0
      %v1248 = vadd.f32 %v1176, %v1247
      %v1249 = vpop.f32.mrb[0].mxu0
      %v1250 = vadd.f32 %v1176, %v1249
      %1251 = vdwg.mxu0
      %v1254 = vcombine.low %v1248, %v1250
      %1256 = vst [vmem:[%s421] sm:$0xff] %v1254
      %1259 = vrot.lane.b32.xlu0 %v1065, 17
      %v1260 = vpop.permute.xlu0 %1259
      %1261 = vrot.lane.b32.xlu0 %v1066, 17
      %v1262 = vpop.permute.xlu0 %1261
      %v1263 = vsel %vm478, %v1260, %v1262
      %v1267 = vsel %vm478, 0.0, %v1260
      %v1268 = vsel %vm478, %v1262, 0.0
      %v1269 = vsel %vm487, %v1267, 0.0
      %v1270 = vsel %vm488, %v1263, 0.0
      %1273 = vrot.lane.b32.xlu0 %v1267, 126
      %v1274 = vpop.permute.xlu0 %1273
      %1275 = vrot.lane.b32.xlu0 %v1263, 126
      %v1276 = vpop.permute.xlu0 %1275
      %1277 = vrot.lane.b32.xlu0 %v1268, 126
      %v1278 = vpop.permute.xlu0 %1277
      %v1279 = vsel %vm503, %v1274, %v1276
      %v1280 = vsel %vm503, %v1276, %v1278
      %v1283 = vsel %vm493, %v1279, 0.0
      %v1284 = vsel %vm494, %v1280, 0.0
      %1285 = vrot.lane.b32.xlu0 %v1267, 112
      %v1286 = vpop.permute.xlu0 %1285
      %1287 = vrot.lane.b32.xlu0 %v1263, 112
      %v1288 = vpop.permute.xlu0 %1287
      %1289 = vrot.lane.b32.xlu0 %v1268, 112
      %v1290 = vpop.permute.xlu0 %1289
      %v1291 = vsel %vm516, %v1286, %v1288
      %v1292 = vsel %vm516, %v1288, %v1290
      %v1295 = vsel %vm487, %v1291, 0.0
      %v1296 = vsel %vm488, %v1292, 0.0
      %1297 = vrot.lane.b32.xlu0 %v1267, 110
      %v1298 = vpop.permute.xlu0 %1297
      %1299 = vrot.lane.b32.xlu0 %v1263, 110
      %v1300 = vpop.permute.xlu0 %1299
      %1301 = vrot.lane.b32.xlu0 %v1268, 110
      %v1302 = vpop.permute.xlu0 %1301
      %v1303 = vsel %vm529, %v1298, %v1300
      %v1304 = vsel %vm529, %v1300, %v1302
      %v1307 = vsel %vm493, %v1303, 0.0
      %v1308 = vsel %vm494, %v1304, 0.0
      %1309 = vrot.lane.b32.xlu0 %v1267, 96
      %v1310 = vpop.permute.xlu0 %1309
      %1311 = vrot.lane.b32.xlu0 %v1263, 96
      %v1312 = vpop.permute.xlu0 %1311
      %1313 = vrot.lane.b32.xlu0 %v1268, 96
      %v1314 = vpop.permute.xlu0 %1313
      %v1315 = vsel %vm542, %v1310, %v1312
      %v1316 = vsel %vm542, %v1312, %v1314
      %v1319 = vsel %vm487, %v1315, 0.0
      %v1320 = vsel %vm488, %v1316, 0.0
      %1321 = vrot.lane.b32.xlu0 %v1267, 94
      %v1322 = vpop.permute.xlu0 %1321
      %1323 = vrot.lane.b32.xlu0 %v1263, 94
      %v1324 = vpop.permute.xlu0 %1323
      %1325 = vrot.lane.b32.xlu0 %v1268, 94
      %v1326 = vpop.permute.xlu0 %1325
      %v1327 = vsel %vm555, %v1322, %v1324
      %v1328 = vsel %vm555, %v1324, %v1326
      %v1331 = vsel %vm493, %v1327, 0.0
      %v1332 = vsel %vm494, %v1328, 0.0
      %1333 = vrot.lane.b32.xlu0 %v1267, 127
      %v1334 = vpop.permute.xlu0 %1333
      %1335 = vrot.lane.b32.xlu0 %v1263, 127
      %v1336 = vpop.permute.xlu0 %1335
      %1337 = vrot.lane.b32.xlu0 %v1268, 127
      %v1338 = vpop.permute.xlu0 %1337
      %v1339 = vsel %vm568, %v1334, %v1336
      %v1340 = vsel %vm568, %v1336, %v1338
      %1343 = vrot.lane.b32.xlu0 %v1267, 111
      %v1344 = vpop.permute.xlu0 %1343
      %1345 = vrot.lane.b32.xlu0 %v1263, 111
      %v1346 = vpop.permute.xlu0 %1345
      %1347 = vrot.lane.b32.xlu0 %v1268, 111
      %v1348 = vpop.permute.xlu0 %1347
      %v1349 = vsel %vm579, %v1344, %v1346
      %v1350 = vsel %vm579, %v1346, %v1348
      %1353 = vrot.lane.b32.xlu0 %v1267, 95
      %v1354 = vpop.permute.xlu0 %1353
      %1355 = vrot.lane.b32.xlu0 %v1263, 95
      %v1356 = vpop.permute.xlu0 %1355
      %1357 = vrot.lane.b32.xlu0 %v1268, 95
      %v1358 = vpop.permute.xlu0 %1357
      %v1359 = vsel %vm590, %v1354, %v1356
      %v1360 = vsel %vm590, %v1356, %v1358
      %1364 = vset.pattern.permute.xlu0 0
      %1365 = vperm.xlu0 %1364, %v438
      %v1366 = vpop.permute.xlu0 %1365
      %v1369 = vsel %vm605, %v437, 0
      %1371 = vmatprep.subr.mxu0 %v1270
      %1372 = vmatpush1.msra.mxu0 %v1269
      %1373 = vmatprep.subr.mxu0 %v1340
      %1374 = vmatpush1.msra.mxu0 %v1339
      %1375 = vmatprep.subr.mxu0 %v1284
      %1376 = vmatpush1.msra.mxu0 %v1283
      %1377 = vmatprep.subr.mxu0 %v1296
      %1378 = vmatpush1.msra.mxu0 %v1295
      %1379 = vmatprep.subr.mxu0 %v1350
      %1380 = vmatpush1.msra.mxu0 %v1349
      %1381 = vmatprep.subr.mxu0 %v1308
      %1382 = vmatpush1.msra.mxu0 %v1307
      %1383 = vmatprep.subr.mxu0 %v1320
      %1384 = vmatpush1.msra.mxu0 %v1319
      %1385 = vmatprep.subr.mxu0 %v1360
      %1386 = vmatpush1.msra.mxu0 %v1359
      %1387 = vmatprep.subr.mxu0 %v1332
      %1388 = vmatpush1.msra.mxu0 %v1331
      %1389 = vmatprep.subr.mxu0 0.0
      %1390 = vmatpush1.msra.mxu0 0.0
      %1391 = vmatprep.subr.mxu0 0.0
      %1392 = vmatpush1.msra.mxu0 0.0
      %1393 = vmatprep.subr.mxu0 0.0
      %1394 = vmatpush1.msra.mxu0 0.0
      %1395 = vmatprep.subr.mxu0 0.0
      %1396 = vmatpush1.msra.mxu0 0.0
      %1397 = vmatprep.subr.mxu0 0.0
      %1398 = vmatpush1.msra.mxu0 0.0
      %1399 = vmatprep.subr.mxu0 0.0
      %1400 = vmatpush1.msra.mxu0 0.0
      %1401 = vmatprep.subr.mxu0 0.0
      %1402 = vmatpush1.msra.mxu0 0.0
      %1403 = vmatprep.subr.mxu0 0.0
      %1404 = vmatpush1.msra.mxu0 0.0
      %1405 = vmatprep.subr.mxu0 0.0
      %1406 = vmatpush1.msra.mxu0 0.0
      %1407 = vmatprep.subr.mxu0 0.0
      %1408 = vmatpush1.msra.mxu0 0.0
      %1409 = vmatprep.subr.mxu0 0.0
      %1410 = vmatpush1.msra.mxu0 0.0
      %1411 = vmatprep.subr.mxu0 0.0
      %1412 = vmatpush1.msra.mxu0 0.0
      %1413 = vmatprep.subr.mxu0 0.0
      %1414 = vmatpush1.msra.mxu0 0.0
      %1415 = vmatprep.subr.mxu0 0.0
      %1416 = vmatpush1.msra.mxu0 0.0
      %1417 = vmatprep.subr.mxu0 0.0
      %1418 = vmatpush1.msra.mxu0 0.0
      %1419 = vmatprep.subr.mxu0 0.0
      %1420 = vmatpush1.msra.mxu0 0.0
      %1421 = vmatprep.subr.mxu0 0.0
      %1422 = vmatpush1.msra.mxu0 0.0
      %1423 = vmatprep.subr.mxu0 0.0
      %1424 = vmatpush1.msra.mxu0 0.0
      %1425 = vmatprep.subr.mxu0 0.0
      %1426 = vmatpush1.msra.mxu0 0.0
      %1427 = vmatprep.subr.mxu0 0.0
      %1428 = vmatpush1.msra.mxu0 0.0
      %1429 = vmatprep.subr.mxu0 0.0
      %1430 = vmatpush1.msra.mxu0 0.0
      %1431 = vmatprep.subr.mxu0 0.0
      %1432 = vmatpush1.msra.mxu0 0.0
      %1433 = vmatprep.subr.mxu0 0.0
      %1434 = vmatpush1.msra.mxu0 0.0
      %1435 = vmatprep.mubr.f32.mxu0 0.0
      %1436 = vmatmul.mubr.f32.gmra.mrb[0].mxu0 %v1369
      %v1437 = vpop.f32.mrb[0].mxu0
      %v1438 = vadd.f32 %v1366, %v1437
      %v1439 = vpop.f32.mrb[0].mxu0
      %v1440 = vadd.f32 %v1366, %v1439
      %1441 = vdwg.mxu0
      %1442 = vst [vmem:[%s426] sm:$0xff] %v1438
      %1443 = vst [vmem:[%s426 + $0x8] sm:$0xff] %v1440
      %p1444 = scmp.lt.s32.totalorder %s24, 1
      %s1445 = scalar_select %p1444, %s24, 1
      %s1446 = smul.addr %s1445, 2
      %s1447 = smul.addr %s1446, 4
      %s1448 = scalar_lea.vmem %s11, %s1447
      %p1449 = scmp.lt.s32.totalorder %s24, 1
      %s1450 = scalar_select %p1449, %s24, 1
      %s1451 = smul.addr %s1450, 2
      %s1452 = smul.addr %s1451, 8
      %s1453 = scalar_lea.vmem %s12, %s1452
      // Predicated region
      $region65: #{_head_forward.1} parent=63 // pred_check
        %p1454 = pneg %p278
      $region66: #{_head_forward.1} parent=63 // pred_check_branch
        %1456 = sbr.rel (%p1454) target = $region68
      $region67: #{_head_forward.1} parent=63 // pred_region
        _
      $region68: #{_head_forward.1} parent=63 // pred_fallthru
        _
      // Predicated region
      $region69: #{_head_forward.1} parent=63 // pred_check
        %p1457 = pneg %p304
      $region70: #{_head_forward.1} parent=63 // pred_check_branch
        %1459 = sbr.rel (%p1457) target = $region72
      $region71: #{_head_forward.1} parent=63 // pred_region
        _
      $region72: #{_head_forward.1} parent=63 // pred_fallthru
        _
    $region64: #{_head_forward.1} parent=5 // pred_fallthru
      _
    %p1460 = scmp.le.s32.totalorder 2, %s19
    // Predicated region
    $region73: #{_head_forward.1} parent=5 // pred_check
      %p1461 = pneg %p1460
    $region74: #{_head_forward.1} parent=5 // pred_check_branch
      %1463 = sbr.rel (%p1461) target = $region76
    $region75: #{_head_forward.1} parent=5 // pred_region
      %s1464 = ssub.s32 %s19, 2
      // Predicated region
      $region77: #{_head_forward.1} parent=75 // pred_check
        %p1465 = pneg %p284
      $region78: #{_head_forward.1} parent=75 // pred_check_branch
        %1467 = sbr.rel (%p1465) target = $region80
      $region79: #{_head_forward.1} parent=75 // pred_region
        %p1468 = scmp.lt.s32.totalorder %s25, 1
        %s1469 = scalar_select %p1468, %s25, 1
        %s1470 = smul.addr %s1469, 2
        %s1471 = smul.addr %s1470, 4
        %s1472 = scalar_lea.vmem %s11, %s1471
      $region80: #{_head_forward.1} parent=75 // pred_fallthru
        _
      // Predicated region
      $region81: #{_head_forward.1} parent=75 // pred_check
        %p1473 = pneg %p310
      $region82: #{_head_forward.1} parent=75 // pred_check_branch
        %1475 = sbr.rel (%p1473) target = $region84
      $region83: #{_head_forward.1} parent=75 // pred_region
        %p1476 = scmp.lt.s32.totalorder %s25, 1
        %s1477 = scalar_select %p1476, %s25, 1
        %s1478 = smul.addr %s1477, 2
        %s1479 = smul.addr %s1478, 8
        %s1480 = scalar_lea.vmem %s12, %s1479
      $region84: #{_head_forward.1} parent=75 // pred_fallthru
        _
    $region76: #{_head_forward.1} parent=5 // pred_fallthru
      _
  $region6: #{_head_forward.1} parent=0 // loop_footer
    %s23 = sadd.s32 1, %s19
  $region7: #{_head_forward.1} parent=0 // loop_footer_branch
    %18 = sbr.rel target = $region3
  $region8: #{_head_forward.1} parent=0 // loop_exit
    _

</llo_original>
